<compile_context>
chip_gen: v7x
topology: tpu7x:2x2x1
jax: 0.10.0
libtpu: 0.0.40
codegen_flags: <defaults>
</compile_context>

<pallas_src>
import jax
import jax.numpy as jnp
import numpy as np
from jax.experimental import pallas as pl
from jax.experimental.pallas import tpu as pltpu


# ----------------------------- fused Pallas kernel -----------------------------

def cnn_fused_kernel(x_ref, w1_ref, b1_ref, w2_ref, b2_ref,
                     wf1_ref, bf1_ref, wf2_ref, bf2_ref, o_ref):
    """Whole CNNMnist forward for one batch tile.

    x_ref : (1, 24*TB, 160) bf16  kh-lowered conv1 operand,
            rows = (out_h, batch-in-tile), lanes = kh*32 + in_w
    o_ref : (TB, 128) f32         log_softmax (lanes 10..127 are padding)
    Activations stay 2-D: rows = h*TB + b; conv-output lanes pack even-width
    groups into [0,128) and odd-width groups into [128,256) so the 2x2
    column pool is a vreg-aligned lane-slice max.
    """
    tb = o_ref.shape[0]
    f32 = jnp.float32
    bf16 = jnp.bfloat16

    # ---- conv1 (1->10, k=5): ONE fused K=160 bf16 MXU matmul ----
    acc1 = jnp.dot(x_ref[0], w1_ref[...], preferred_element_type=f32)
    acc1 = acc1 + b1_ref[...]                               # (24*TB, 256)

    # ---- 2x2 max-pool + relu: row pairs via sublane-aligned slices,
    #      column pairs via vreg-aligned lane halves (zero MXU cost).
    # TODO(synk): if ld/st ever becomes the binding unit, write the row maxima
    # into a VMEM scratch with pl.ds offsets instead of the concatenate.
    rows = [jnp.maximum(acc1[(2 * i) * tb:(2 * i + 1) * tb],
                        acc1[(2 * i + 1) * tb:(2 * i + 2) * tb])
            for i in range(12)]
    y1 = jnp.concatenate(rows, axis=0)                      # (12*TB, 256)
    p1 = jnp.maximum(jnp.maximum(y1[:, 0:128], y1[:, 128:256]), 0.0)  # (12*TB,128)

    # ---- conv2 (10->20, k=5): 5 kh-tap bf16 matmuls (K=128) ----
    # TODO(synk): nn.Dropout2d is identity at inference; training-mode channel
    # dropout would use pltpu.prng_seed + pltpu.prng_random_bits here.
    p1b = p1.astype(bf16)
    acc2 = jnp.dot(p1b[0:8 * tb], w2_ref[0], preferred_element_type=f32)
    for kh in range(1, 5):
        acc2 = acc2 + jnp.dot(p1b[kh * tb:(kh + 8) * tb], w2_ref[kh],
                              preferred_element_type=f32)
    acc2 = acc2 + b2_ref[...]                               # (8*TB, 256)

    # ---- 2x2 max-pool + relu ----
    rows = [jnp.maximum(acc2[(2 * i) * tb:(2 * i + 1) * tb],
                        acc2[(2 * i + 1) * tb:(2 * i + 2) * tb])
            for i in range(4)]
    y2 = jnp.concatenate(rows, axis=0)                      # (4*TB, 256)
    p2 = jnp.maximum(jnp.maximum(y2[:, 0:128], y2[:, 128:256]), 0.0)  # (4*TB,128)

    # ---- fc1 (320->50) + relu: 4 bf16 matmuls over the pooled-row blocks ----
    p2b = p2.astype(bf16)
    h = jnp.dot(p2b[0:tb], wf1_ref[0], preferred_element_type=f32)
    for r in range(1, 4):
        h = h + jnp.dot(p2b[r * tb:(r + 1) * tb], wf1_ref[r],
                        preferred_element_type=f32)
    h = jnp.maximum(h + bf1_ref[...], 0.0)                  # (TB, 50)
    # TODO(synk): F.dropout is identity at inference (self.training = False).

    # ---- fc2 (50->10, lane-padded to 128) + log_softmax ----
    z = jnp.dot(h.astype(bf16), wf2_ref[...], preferred_element_type=f32)
    z = z + bf2_ref[...]                                    # pad lanes get -1e30
    zmax = jnp.max(z, axis=-1, keepdims=True)
    ez = jnp.exp(z - zmax)
    o_ref[...] = (z - zmax) - jnp.log(jnp.sum(ez, axis=-1, keepdims=True))


# ----------------------------- wrapper -----------------------------

def _round_up(n, m):
    return ((n + m - 1) // m) * m


def cnn_mnist_forward(x, lowered):
    """x: (B, 1, 28, 28) float32 NCHW -> (B, 10) log-probabilities."""
    B = x.shape[0]
    tb = min(128, _round_up(B, 8))       # batch tile, multiple of 8
    b_pad = _round_up(B, tb)
    ntiles = b_pad // tb
    # v7x megacore: keep >= 2 tiles on the "parallel" axis so both TensorCores
    # get work (no effect on single-TC v5e/v6e; tiny batches are skipped).
    if ntiles == 1 and tb % 16 == 0:
        tb //= 2
        ntiles = 2

    x3 = x.reshape(B, 28, 28).astype(jnp.float32)
    if b_pad != B:
        x3 = jnp.pad(x3, ((0, b_pad - B), (0, 0), (0, 0)))
    # Wrapper-side layout plumbing only: kh-lowered conv1 operand
    #   xlow[t, h*tb + b, kh*32 + w_in] = x[t*tb + b, h + kh, w_in]   (bf16)
    win = jnp.stack([x3[:, kh:kh + 24, :] for kh in range(5)], axis=2)
    win = jnp.pad(win, ((0, 0), (0, 0), (0, 0), (0, 4)))     # 28 -> 32 lanes
    win = win.reshape(ntiles, tb, 24, 160)
    xlow = jnp.transpose(win, (0, 2, 1, 3)).reshape(ntiles, 24 * tb, 160)
    xlow = xlow.astype(jnp.bfloat16)

    def _full(a):
        nd = a.ndim
        return pl.BlockSpec(a.shape, lambda i, _nd=nd: (0,) * _nd)

    out = pl.pallas_call(
        cnn_fused_kernel,
        out_shape=jax.ShapeDtypeStruct((b_pad, 128), jnp.float32),
        grid=(ntiles,),
        in_specs=[pl.BlockSpec((1, 24 * tb, 160), lambda i: (i, 0, 0))]
                 + [_full(a) for a in lowered],
        out_specs=pl.BlockSpec((tb, 128), lambda i: (i, 0)),
        compiler_params=pltpu.CompilerParams(
            dimension_semantics=("parallel",),
            vmem_limit_bytes=48 * 1024 * 1024),
    )(xlow, *lowered)
    return out[:B, :10]


# ----------------------------- parameter preparation -----------------------------

def init_torch_params(key):
    """Deterministic parameters in the original PyTorch layouts."""
    ks = jax.random.split(key, 8)
    s = 0.1
    return {
        "conv1_w": jax.random.normal(ks[0], (10, 1, 5, 5), jnp.float32) * s,
        "conv1_b": jax.random.normal(ks[1], (10,), jnp.float32) * s,
        "conv2_w": jax.random.normal(ks[2], (20, 10, 5, 5), jnp.float32) * s,
        "conv2_b": jax.random.normal(ks[3], (20,), jnp.float32) * s,
        "fc1_w": jax.random.normal(ks[4], (50, 320), jnp.float32) * s,
        "fc1_b": jax.random.normal(ks[5], (50,), jnp.float32) * s,
        "fc2_w": jax.random.normal(ks[6], (10, 50), jnp.float32) * s,
        "fc2_b": jax.random.normal(ks[7], (10,), jnp.float32) * s,
    }


def lower_params(tp):
    """Host-side, one-time rearrangement into the packed-lane bf16 GEMM form.

    Conv output lane packing (both convs): even output-width positions live in
    lanes [0, 128), odd positions in [128, 256), so the 2x2 column pool is a
    vreg-aligned lane-slice max and its result is already in the compact
    layout the next layer consumes.
    """
    c1w = np.asarray(tp["conv1_w"], np.float32)
    c1b = np.asarray(tp["conv1_b"], np.float32)
    c2w = np.asarray(tp["conv2_w"], np.float32)
    c2b = np.asarray(tp["conv2_b"], np.float32)
    f1w = np.asarray(tp["fc1_w"], np.float32)
    f1b = np.asarray(tp["fc1_b"], np.float32)
    f2w = np.asarray(tp["fc2_w"], np.float32)
    f2b = np.asarray(tp["fc2_b"], np.float32)

    def col1(w):                     # conv1 output lane base for width w (10 chans)
        return (w // 2) * 10 + 128 * (w % 2)

    def col2(w):                     # conv2 output lane base for width w (20 chans)
        return (w // 2) * 20 + 128 * (w % 2)

    # conv1 fused over kh: operand lane = kh*32 + in_w  (K = 160, N = 256).
    w1all = np.zeros((160, 256), np.float32)
    for kh in range(5):
        for kw in range(5):
            for w in range(24):
                w1all[kh * 32 + w + kw, col1(w):col1(w) + 10] = c1w[:, 0, kh, kw]
    b1l = np.zeros((1, 256), np.float32)
    for w in range(24):
        b1l[0, col1(w):col1(w) + 10] = c1b

    # conv2 per kh tap: operand lane = pooled_w*10 + ci  (K = 128, rows 120.. zero).
    w2m = np.zeros((5, 128, 256), np.float32)
    for kh in range(5):
        for kw in range(5):
            for w in range(8):
                wi = w + kw
                for ci in range(10):
                    w2m[kh, wi * 10 + ci, col2(w):col2(w) + 20] = c2w[:, ci, kh, kw]
    b2l = np.zeros((1, 256), np.float32)
    for w in range(8):
        b2l[0, col2(w):col2(w) + 20] = c2b

    # fc1: PyTorch flatten order (co, h, w); our p2 lanes = w*20 + co (rows 80.. zero).
    wf1 = np.zeros((4, 128, 50), np.float32)
    for h in range(4):
        for w in range(4):
            for co in range(20):
                wf1[h, w * 20 + co, :] = f1w[:, co * 16 + h * 4 + w]
    bf1 = f1b.reshape(1, 50)

    # fc2 lane-padded to 128; pad bias = -1e30 so log_softmax ignores the pads.
    wf2 = np.zeros((50, 128), np.float32)
    wf2[:, :10] = f2w.T
    bf2 = np.full((1, 128), -1e30, np.float32)
    bf2[0, :10] = f2b

    bf = jnp.bfloat16
    return (jnp.asarray(w1all, bf), jnp.asarray(b1l),
            jnp.asarray(w2m, bf), jnp.asarray(b2l),
            jnp.asarray(wf1, bf), jnp.asarray(bf1),
            jnp.asarray(wf2, bf), jnp.asarray(bf2))


# ------------------ plain-JAX reference (correctness check) ------------------

def reference_forward(x, tp):
    dn = ("NCHW", "OIHW", "NCHW")

    def maxpool2(y):
        b, c, hh, ww = y.shape
        return jnp.max(y.reshape(b, c, hh // 2, 2, ww // 2, 2), axis=(3, 5))

    y = jax.lax.conv_general_dilated(x, tp["conv1_w"], (1, 1), "VALID",
                                     dimension_numbers=dn)
    y = jnp.maximum(maxpool2(y + tp["conv1_b"].reshape(1, -1, 1, 1)), 0.0)
    y = jax.lax.conv_general_dilated(y, tp["conv2_w"], (1, 1), "VALID",
                                     dimension_numbers=dn)
    y = jnp.maximum(maxpool2(y + tp["conv2_b"].reshape(1, -1, 1, 1)), 0.0)
    f = y.reshape(y.shape[0], 320)
    h = jnp.maximum(f @ tp["fc1_w"].T + tp["fc1_b"], 0.0)
    z = h @ tp["fc2_w"].T + tp["fc2_b"]
    return jax.nn.log_softmax(z, axis=-1)


if __name__ == "__main__":
    key = jax.random.PRNGKey(0)
    k_params, k_x = jax.random.split(key)
    torch_params = init_torch_params(k_params)
    lowered = lower_params(torch_params)
    # MNIST-shaped input (the 320-dim flatten requires 1x28x28); batch = 2.
    x = jax.random.normal(k_x, (2, 1, 28, 28), jnp.float32)

    out = jax.jit(cnn_mnist_forward)(x, lowered)
    out = jax.block_until_ready(out)
    assert out.shape == (2, 10)
    # rows are valid log-probabilities
    assert jnp.allclose(jnp.sum(jnp.exp(out), axis=-1), 1.0, atol=1e-3)
    # matches a plain-JAX rendering of the PyTorch forward (bf16 MXU tolerance)
    ref = reference_forward(x, torch_params)
    assert jnp.allclose(out, ref, atol=5e-2, rtol=5e-2), \
        float(jnp.max(jnp.abs(out - ref)))
    print("KERNEL_OK")
</pallas_src>

<mosaic_0001>
module attributes {stable_mosaic.version = 11 : i64} {
  func.func @cnn_fused_kernel(%arg0: i32, %arg1: memref<1x192x160xbf16, #tpu.memory_space<vmem>>, %arg2: memref<160x256xbf16, #tpu.memory_space<vmem>>, %arg3: memref<1x256xf32, #tpu.memory_space<vmem>>, %arg4: memref<5x128x256xbf16, #tpu.memory_space<vmem>>, %arg5: memref<1x256xf32, #tpu.memory_space<vmem>>, %arg6: memref<4x128x50xbf16, #tpu.memory_space<vmem>>, %arg7: memref<1x50xf32, #tpu.memory_space<vmem>>, %arg8: memref<50x128xbf16, #tpu.memory_space<vmem>>, %arg9: memref<1x128xf32, #tpu.memory_space<vmem>>, %arg10: memref<8x128xf32, #tpu.memory_space<vmem>>) attributes {dimension_semantics = [#tpu.dimension_semantics<parallel>], iteration_bounds = array<i64: 1>, scalar_prefetch = 0 : i64, scratch_operands = 0 : i64, tpu.core_type = #tpu.core_type<tc>, window_params = [{transform_indices = @transform_0, window_bounds = array<i64: 1, 192, 160>}, {pipeline_mode = #tpu.pipeline_mode<synchronous>, transform_indices = @transform_1, window_bounds = array<i64: 160, 256>}, {pipeline_mode = #tpu.pipeline_mode<synchronous>, transform_indices = @transform_2, window_bounds = array<i64: 1, 256>}, {pipeline_mode = #tpu.pipeline_mode<synchronous>, transform_indices = @transform_3, window_bounds = array<i64: 5, 128, 256>}, {pipeline_mode = #tpu.pipeline_mode<synchronous>, transform_indices = @transform_4, window_bounds = array<i64: 1, 256>}, {pipeline_mode = #tpu.pipeline_mode<synchronous>, transform_indices = @transform_5, window_bounds = array<i64: 4, 128, 50>}, {pipeline_mode = #tpu.pipeline_mode<synchronous>, transform_indices = @transform_6, window_bounds = array<i64: 1, 50>}, {pipeline_mode = #tpu.pipeline_mode<synchronous>, transform_indices = @transform_7, window_bounds = array<i64: 50, 128>}, {pipeline_mode = #tpu.pipeline_mode<synchronous>, transform_indices = @transform_8, window_bounds = array<i64: 1, 128>}, {transform_indices = @transform_9, window_bounds = array<i64: 8, 128>}]} {
    %c0 = arith.constant 0 : index
    %c0_0 = arith.constant 0 : index
    %c0_1 = arith.constant 0 : index
    %0 = vector.load %arg1[%c0, %c0_0, %c0_1] : memref<1x192x160xbf16, #tpu.memory_space<vmem>>, vector<1x192x160xbf16>
    %1 = vector.shape_cast %0 : vector<1x192x160xbf16> to vector<192x160xbf16>
    %c0_2 = arith.constant 0 : index
    %c0_3 = arith.constant 0 : index
    %2 = vector.load %arg2[%c0_2, %c0_3] : memref<160x256xbf16, #tpu.memory_space<vmem>>, vector<160x256xbf16>
    %cst = arith.constant dense<0.000000e+00> : vector<192x256xf32>
    %3 = tpu.matmul %1, %2, %cst {dimension_numbers = #tpu.dot_dimension_numbers<[1], [0], [0], [1], [0, 0, 1, 1], [], []>} : vector<192x160xbf16>, vector<160x256xbf16>, vector<192x256xf32> -> vector<192x256xf32>
    %c0_4 = arith.constant 0 : index
    %c0_5 = arith.constant 0 : index
    %4 = vector.load %arg3[%c0_4, %c0_5] : memref<1x256xf32, #tpu.memory_space<vmem>>, vector<1x256xf32>
    %5 = vector.broadcast %4 : vector<1x256xf32> to vector<192x256xf32>
    %6 = arith.addf %3, %5 : vector<192x256xf32>
    %7 = vector.extract_strided_slice %6 {offsets = [0, 0], sizes = [8, 256], strides = [1, 1]} : vector<192x256xf32> to vector<8x256xf32>
    %8 = vector.extract_strided_slice %6 {offsets = [8, 0], sizes = [8, 256], strides = [1, 1]} : vector<192x256xf32> to vector<8x256xf32>
    %9 = arith.maximumf %7, %8 : vector<8x256xf32>
    %10 = vector.extract_strided_slice %6 {offsets = [16, 0], sizes = [8, 256], strides = [1, 1]} : vector<192x256xf32> to vector<8x256xf32>
    %11 = vector.extract_strided_slice %6 {offsets = [24, 0], sizes = [8, 256], strides = [1, 1]} : vector<192x256xf32> to vector<8x256xf32>
    %12 = arith.maximumf %10, %11 : vector<8x256xf32>
    %13 = vector.extract_strided_slice %6 {offsets = [32, 0], sizes = [8, 256], strides = [1, 1]} : vector<192x256xf32> to vector<8x256xf32>
    %14 = vector.extract_strided_slice %6 {offsets = [40, 0], sizes = [8, 256], strides = [1, 1]} : vector<192x256xf32> to vector<8x256xf32>
    %15 = arith.maximumf %13, %14 : vector<8x256xf32>
    %16 = vector.extract_strided_slice %6 {offsets = [48, 0], sizes = [8, 256], strides = [1, 1]} : vector<192x256xf32> to vector<8x256xf32>
    %17 = vector.extract_strided_slice %6 {offsets = [56, 0], sizes = [8, 256], strides = [1, 1]} : vector<192x256xf32> to vector<8x256xf32>
    %18 = arith.maximumf %16, %17 : vector<8x256xf32>
    %19 = vector.extract_strided_slice %6 {offsets = [64, 0], sizes = [8, 256], strides = [1, 1]} : vector<192x256xf32> to vector<8x256xf32>
    %20 = vector.extract_strided_slice %6 {offsets = [72, 0], sizes = [8, 256], strides = [1, 1]} : vector<192x256xf32> to vector<8x256xf32>
    %21 = arith.maximumf %19, %20 : vector<8x256xf32>
    %22 = vector.extract_strided_slice %6 {offsets = [80, 0], sizes = [8, 256], strides = [1, 1]} : vector<192x256xf32> to vector<8x256xf32>
    %23 = vector.extract_strided_slice %6 {offsets = [88, 0], sizes = [8, 256], strides = [1, 1]} : vector<192x256xf32> to vector<8x256xf32>
    %24 = arith.maximumf %22, %23 : vector<8x256xf32>
    %25 = vector.extract_strided_slice %6 {offsets = [96, 0], sizes = [8, 256], strides = [1, 1]} : vector<192x256xf32> to vector<8x256xf32>
    %26 = vector.extract_strided_slice %6 {offsets = [104, 0], sizes = [8, 256], strides = [1, 1]} : vector<192x256xf32> to vector<8x256xf32>
    %27 = arith.maximumf %25, %26 : vector<8x256xf32>
    %28 = vector.extract_strided_slice %6 {offsets = [112, 0], sizes = [8, 256], strides = [1, 1]} : vector<192x256xf32> to vector<8x256xf32>
    %29 = vector.extract_strided_slice %6 {offsets = [120, 0], sizes = [8, 256], strides = [1, 1]} : vector<192x256xf32> to vector<8x256xf32>
    %30 = arith.maximumf %28, %29 : vector<8x256xf32>
    %31 = vector.extract_strided_slice %6 {offsets = [128, 0], sizes = [8, 256], strides = [1, 1]} : vector<192x256xf32> to vector<8x256xf32>
    %32 = vector.extract_strided_slice %6 {offsets = [136, 0], sizes = [8, 256], strides = [1, 1]} : vector<192x256xf32> to vector<8x256xf32>
    %33 = arith.maximumf %31, %32 : vector<8x256xf32>
    %34 = vector.extract_strided_slice %6 {offsets = [144, 0], sizes = [8, 256], strides = [1, 1]} : vector<192x256xf32> to vector<8x256xf32>
    %35 = vector.extract_strided_slice %6 {offsets = [152, 0], sizes = [8, 256], strides = [1, 1]} : vector<192x256xf32> to vector<8x256xf32>
    %36 = arith.maximumf %34, %35 : vector<8x256xf32>
    %37 = vector.extract_strided_slice %6 {offsets = [160, 0], sizes = [8, 256], strides = [1, 1]} : vector<192x256xf32> to vector<8x256xf32>
    %38 = vector.extract_strided_slice %6 {offsets = [168, 0], sizes = [8, 256], strides = [1, 1]} : vector<192x256xf32> to vector<8x256xf32>
    %39 = arith.maximumf %37, %38 : vector<8x256xf32>
    %40 = vector.extract_strided_slice %6 {offsets = [176, 0], sizes = [8, 256], strides = [1, 1]} : vector<192x256xf32> to vector<8x256xf32>
    %41 = vector.extract_strided_slice %6 {offsets = [184, 0], sizes = [8, 256], strides = [1, 1]} : vector<192x256xf32> to vector<8x256xf32>
    %42 = arith.maximumf %40, %41 : vector<8x256xf32>
    %43 = tpu.concatenate %9, %12, %15, %18, %21, %24, %27, %30, %33, %36, %39, %42 in 0 : vector<8x256xf32>, vector<8x256xf32>, vector<8x256xf32>, vector<8x256xf32>, vector<8x256xf32>, vector<8x256xf32>, vector<8x256xf32>, vector<8x256xf32>, vector<8x256xf32>, vector<8x256xf32>, vector<8x256xf32>, vector<8x256xf32> -> vector<96x256xf32>
    %44 = vector.extract_strided_slice %43 {offsets = [0, 0], sizes = [96, 128], strides = [1, 1]} : vector<96x256xf32> to vector<96x128xf32>
    %45 = vector.extract_strided_slice %43 {offsets = [0, 128], sizes = [96, 128], strides = [1, 1]} : vector<96x256xf32> to vector<96x128xf32>
    %46 = arith.maximumf %44, %45 : vector<96x128xf32>
    %cst_6 = arith.constant 0.000000e+00 : f32
    %47 = vector.broadcast %cst_6 : f32 to vector<96x128xf32>
    %48 = arith.maximumf %46, %47 : vector<96x128xf32>
    %49 = arith.truncf %48 : vector<96x128xf32> to vector<96x128xbf16>
    %50 = vector.extract_strided_slice %49 {offsets = [0, 0], sizes = [64, 128], strides = [1, 1]} : vector<96x128xbf16> to vector<64x128xbf16>
    %c0_7 = arith.constant 0 : index
    %c0_8 = arith.constant 0 : index
    %c0_9 = arith.constant 0 : index
    %51 = vector.load %arg4[%c0_7, %c0_8, %c0_9] : memref<5x128x256xbf16, #tpu.memory_space<vmem>>, vector<1x128x256xbf16>
    %52 = vector.shape_cast %51 : vector<1x128x256xbf16> to vector<128x256xbf16>
    %cst_10 = arith.constant dense<0.000000e+00> : vector<64x256xf32>
    %53 = tpu.matmul %50, %52, %cst_10 {dimension_numbers = #tpu.dot_dimension_numbers<[1], [0], [0], [1], [0, 0, 1, 1], [], []>} : vector<64x128xbf16>, vector<128x256xbf16>, vector<64x256xf32> -> vector<64x256xf32>
    %54 = vector.extract_strided_slice %49 {offsets = [8, 0], sizes = [64, 128], strides = [1, 1]} : vector<96x128xbf16> to vector<64x128xbf16>
    %c1 = arith.constant 1 : index
    %c0_11 = arith.constant 0 : index
    %c0_12 = arith.constant 0 : index
    %55 = vector.load %arg4[%c1, %c0_11, %c0_12] : memref<5x128x256xbf16, #tpu.memory_space<vmem>>, vector<1x128x256xbf16>
    %56 = vector.shape_cast %55 : vector<1x128x256xbf16> to vector<128x256xbf16>
    %cst_13 = arith.constant dense<0.000000e+00> : vector<64x256xf32>
    %57 = tpu.matmul %54, %56, %cst_13 {dimension_numbers = #tpu.dot_dimension_numbers<[1], [0], [0], [1], [0, 0, 1, 1], [], []>} : vector<64x128xbf16>, vector<128x256xbf16>, vector<64x256xf32> -> vector<64x256xf32>
    %58 = arith.addf %53, %57 : vector<64x256xf32>
    %59 = vector.extract_strided_slice %49 {offsets = [16, 0], sizes = [64, 128], strides = [1, 1]} : vector<96x128xbf16> to vector<64x128xbf16>
    %c2 = arith.constant 2 : index
    %c0_14 = arith.constant 0 : index
    %c0_15 = arith.constant 0 : index
    %60 = vector.load %arg4[%c2, %c0_14, %c0_15] : memref<5x128x256xbf16, #tpu.memory_space<vmem>>, vector<1x128x256xbf16>
    %61 = vector.shape_cast %60 : vector<1x128x256xbf16> to vector<128x256xbf16>
    %cst_16 = arith.constant dense<0.000000e+00> : vector<64x256xf32>
    %62 = tpu.matmul %59, %61, %cst_16 {dimension_numbers = #tpu.dot_dimension_numbers<[1], [0], [0], [1], [0, 0, 1, 1], [], []>} : vector<64x128xbf16>, vector<128x256xbf16>, vector<64x256xf32> -> vector<64x256xf32>
    %63 = arith.addf %58, %62 : vector<64x256xf32>
    %64 = vector.extract_strided_slice %49 {offsets = [24, 0], sizes = [64, 128], strides = [1, 1]} : vector<96x128xbf16> to vector<64x128xbf16>
    %c3 = arith.constant 3 : index
    %c0_17 = arith.constant 0 : index
    %c0_18 = arith.constant 0 : index
    %65 = vector.load %arg4[%c3, %c0_17, %c0_18] : memref<5x128x256xbf16, #tpu.memory_space<vmem>>, vector<1x128x256xbf16>
    %66 = vector.shape_cast %65 : vector<1x128x256xbf16> to vector<128x256xbf16>
    %cst_19 = arith.constant dense<0.000000e+00> : vector<64x256xf32>
    %67 = tpu.matmul %64, %66, %cst_19 {dimension_numbers = #tpu.dot_dimension_numbers<[1], [0], [0], [1], [0, 0, 1, 1], [], []>} : vector<64x128xbf16>, vector<128x256xbf16>, vector<64x256xf32> -> vector<64x256xf32>
    %68 = arith.addf %63, %67 : vector<64x256xf32>
    %69 = vector.extract_strided_slice %49 {offsets = [32, 0], sizes = [64, 128], strides = [1, 1]} : vector<96x128xbf16> to vector<64x128xbf16>
    %c4 = arith.constant 4 : index
    %c0_20 = arith.constant 0 : index
    %c0_21 = arith.constant 0 : index
    %70 = vector.load %arg4[%c4, %c0_20, %c0_21] : memref<5x128x256xbf16, #tpu.memory_space<vmem>>, vector<1x128x256xbf16>
    %71 = vector.shape_cast %70 : vector<1x128x256xbf16> to vector<128x256xbf16>
    %cst_22 = arith.constant dense<0.000000e+00> : vector<64x256xf32>
    %72 = tpu.matmul %69, %71, %cst_22 {dimension_numbers = #tpu.dot_dimension_numbers<[1], [0], [0], [1], [0, 0, 1, 1], [], []>} : vector<64x128xbf16>, vector<128x256xbf16>, vector<64x256xf32> -> vector<64x256xf32>
    %73 = arith.addf %68, %72 : vector<64x256xf32>
    %c0_23 = arith.constant 0 : index
    %c0_24 = arith.constant 0 : index
    %74 = vector.load %arg5[%c0_23, %c0_24] : memref<1x256xf32, #tpu.memory_space<vmem>>, vector<1x256xf32>
    %75 = vector.broadcast %74 : vector<1x256xf32> to vector<64x256xf32>
    %76 = arith.addf %73, %75 : vector<64x256xf32>
    %77 = vector.extract_strided_slice %76 {offsets = [0, 0], sizes = [8, 256], strides = [1, 1]} : vector<64x256xf32> to vector<8x256xf32>
    %78 = vector.extract_strided_slice %76 {offsets = [8, 0], sizes = [8, 256], strides = [1, 1]} : vector<64x256xf32> to vector<8x256xf32>
    %79 = arith.maximumf %77, %78 : vector<8x256xf32>
    %80 = vector.extract_strided_slice %76 {offsets = [16, 0], sizes = [8, 256], strides = [1, 1]} : vector<64x256xf32> to vector<8x256xf32>
    %81 = vector.extract_strided_slice %76 {offsets = [24, 0], sizes = [8, 256], strides = [1, 1]} : vector<64x256xf32> to vector<8x256xf32>
    %82 = arith.maximumf %80, %81 : vector<8x256xf32>
    %83 = vector.extract_strided_slice %76 {offsets = [32, 0], sizes = [8, 256], strides = [1, 1]} : vector<64x256xf32> to vector<8x256xf32>
    %84 = vector.extract_strided_slice %76 {offsets = [40, 0], sizes = [8, 256], strides = [1, 1]} : vector<64x256xf32> to vector<8x256xf32>
    %85 = arith.maximumf %83, %84 : vector<8x256xf32>
    %86 = vector.extract_strided_slice %76 {offsets = [48, 0], sizes = [8, 256], strides = [1, 1]} : vector<64x256xf32> to vector<8x256xf32>
    %87 = vector.extract_strided_slice %76 {offsets = [56, 0], sizes = [8, 256], strides = [1, 1]} : vector<64x256xf32> to vector<8x256xf32>
    %88 = arith.maximumf %86, %87 : vector<8x256xf32>
    %89 = tpu.concatenate %79, %82, %85, %88 in 0 : vector<8x256xf32>, vector<8x256xf32>, vector<8x256xf32>, vector<8x256xf32> -> vector<32x256xf32>
    %90 = vector.extract_strided_slice %89 {offsets = [0, 0], sizes = [32, 128], strides = [1, 1]} : vector<32x256xf32> to vector<32x128xf32>
    %91 = vector.extract_strided_slice %89 {offsets = [0, 128], sizes = [32, 128], strides = [1, 1]} : vector<32x256xf32> to vector<32x128xf32>
    %92 = arith.maximumf %90, %91 : vector<32x128xf32>
    %cst_25 = arith.constant 0.000000e+00 : f32
    %93 = vector.broadcast %cst_25 : f32 to vector<32x128xf32>
    %94 = arith.maximumf %92, %93 : vector<32x128xf32>
    %95 = arith.truncf %94 : vector<32x128xf32> to vector<32x128xbf16>
    %96 = vector.extract_strided_slice %95 {offsets = [0, 0], sizes = [8, 128], strides = [1, 1]} : vector<32x128xbf16> to vector<8x128xbf16>
    %c0_26 = arith.constant 0 : index
    %c0_27 = arith.constant 0 : index
    %c0_28 = arith.constant 0 : index
    %97 = vector.load %arg6[%c0_26, %c0_27, %c0_28] : memref<4x128x50xbf16, #tpu.memory_space<vmem>>, vector<1x128x50xbf16>
    %98 = vector.shape_cast %97 : vector<1x128x50xbf16> to vector<128x50xbf16>
    %cst_29 = arith.constant dense<0.000000e+00> : vector<8x50xf32>
    %99 = tpu.matmul %96, %98, %cst_29 {dimension_numbers = #tpu.dot_dimension_numbers<[1], [0], [0], [1], [0, 0, 1, 1], [], []>} : vector<8x128xbf16>, vector<128x50xbf16>, vector<8x50xf32> -> vector<8x50xf32>
    %100 = vector.extract_strided_slice %95 {offsets = [8, 0], sizes = [8, 128], strides = [1, 1]} : vector<32x128xbf16> to vector<8x128xbf16>
    %c1_30 = arith.constant 1 : index
    %c0_31 = arith.constant 0 : index
    %c0_32 = arith.constant 0 : index
    %101 = vector.load %arg6[%c1_30, %c0_31, %c0_32] : memref<4x128x50xbf16, #tpu.memory_space<vmem>>, vector<1x128x50xbf16>
    %102 = vector.shape_cast %101 : vector<1x128x50xbf16> to vector<128x50xbf16>
    %cst_33 = arith.constant dense<0.000000e+00> : vector<8x50xf32>
    %103 = tpu.matmul %100, %102, %cst_33 {dimension_numbers = #tpu.dot_dimension_numbers<[1], [0], [0], [1], [0, 0, 1, 1], [], []>} : vector<8x128xbf16>, vector<128x50xbf16>, vector<8x50xf32> -> vector<8x50xf32>
    %104 = arith.addf %99, %103 : vector<8x50xf32>
    %105 = vector.extract_strided_slice %95 {offsets = [16, 0], sizes = [8, 128], strides = [1, 1]} : vector<32x128xbf16> to vector<8x128xbf16>
    %c2_34 = arith.constant 2 : index
    %c0_35 = arith.constant 0 : index
    %c0_36 = arith.constant 0 : index
    %106 = vector.load %arg6[%c2_34, %c0_35, %c0_36] : memref<4x128x50xbf16, #tpu.memory_space<vmem>>, vector<1x128x50xbf16>
    %107 = vector.shape_cast %106 : vector<1x128x50xbf16> to vector<128x50xbf16>
    %cst_37 = arith.constant dense<0.000000e+00> : vector<8x50xf32>
    %108 = tpu.matmul %105, %107, %cst_37 {dimension_numbers = #tpu.dot_dimension_numbers<[1], [0], [0], [1], [0, 0, 1, 1], [], []>} : vector<8x128xbf16>, vector<128x50xbf16>, vector<8x50xf32> -> vector<8x50xf32>
    %109 = arith.addf %104, %108 : vector<8x50xf32>
    %110 = vector.extract_strided_slice %95 {offsets = [24, 0], sizes = [8, 128], strides = [1, 1]} : vector<32x128xbf16> to vector<8x128xbf16>
    %c3_38 = arith.constant 3 : index
    %c0_39 = arith.constant 0 : index
    %c0_40 = arith.constant 0 : index
    %111 = vector.load %arg6[%c3_38, %c0_39, %c0_40] : memref<4x128x50xbf16, #tpu.memory_space<vmem>>, vector<1x128x50xbf16>
    %112 = vector.shape_cast %111 : vector<1x128x50xbf16> to vector<128x50xbf16>
    %cst_41 = arith.constant dense<0.000000e+00> : vector<8x50xf32>
    %113 = tpu.matmul %110, %112, %cst_41 {dimension_numbers = #tpu.dot_dimension_numbers<[1], [0], [0], [1], [0, 0, 1, 1], [], []>} : vector<8x128xbf16>, vector<128x50xbf16>, vector<8x50xf32> -> vector<8x50xf32>
    %114 = arith.addf %109, %113 : vector<8x50xf32>
    %c0_42 = arith.constant 0 : index
    %c0_43 = arith.constant 0 : index
    %115 = vector.load %arg7[%c0_42, %c0_43] : memref<1x50xf32, #tpu.memory_space<vmem>>, vector<1x50xf32>
    %116 = vector.broadcast %115 : vector<1x50xf32> to vector<8x50xf32>
    %117 = arith.addf %114, %116 : vector<8x50xf32>
    %cst_44 = arith.constant 0.000000e+00 : f32
    %118 = vector.broadcast %cst_44 : f32 to vector<8x50xf32>
    %119 = arith.maximumf %117, %118 : vector<8x50xf32>
    %120 = arith.truncf %119 : vector<8x50xf32> to vector<8x50xbf16>
    %c0_45 = arith.constant 0 : index
    %c0_46 = arith.constant 0 : index
    %121 = vector.load %arg8[%c0_45, %c0_46] : memref<50x128xbf16, #tpu.memory_space<vmem>>, vector<50x128xbf16>
    %cst_47 = arith.constant dense<0.000000e+00> : vector<8x128xf32>
    %122 = tpu.matmul %120, %121, %cst_47 {dimension_numbers = #tpu.dot_dimension_numbers<[1], [0], [0], [1], [0, 0, 1, 1], [], []>} : vector<8x50xbf16>, vector<50x128xbf16>, vector<8x128xf32> -> vector<8x128xf32>
    %c0_48 = arith.constant 0 : index
    %c0_49 = arith.constant 0 : index
    %123 = vector.load %arg9[%c0_48, %c0_49] : memref<1x128xf32, #tpu.memory_space<vmem>>, vector<1x128xf32>
    %124 = vector.broadcast %123 : vector<1x128xf32> to vector<8x128xf32>
    %125 = arith.addf %122, %124 : vector<8x128xf32>
    %cst_50 = arith.constant dense<0xFF800000> : vector<8xf32>
    %126 = vector.multi_reduction <maximumf>, %125, %cst_50 [1] : vector<8x128xf32> to vector<8xf32>
    %127 = vector.shape_cast %126 : vector<8xf32> to vector<8x1xf32>
    %128 = vector.broadcast %127 : vector<8x1xf32> to vector<8x128xf32>
    %129 = arith.subf %125, %128 : vector<8x128xf32>
    %130 = math.exp %129 : vector<8x128xf32>
    %131 = vector.broadcast %127 : vector<8x1xf32> to vector<8x128xf32>
    %132 = arith.subf %125, %131 : vector<8x128xf32>
    %cst_51 = arith.constant dense<0.000000e+00> : vector<8xf32>
    %133 = vector.multi_reduction <add>, %130, %cst_51 [1] : vector<8x128xf32> to vector<8xf32>
    %134 = vector.shape_cast %133 : vector<8xf32> to vector<8x1xf32>
    %135 = math.log %134 : vector<8x1xf32>
    %136 = vector.broadcast %135 : vector<8x1xf32> to vector<8x128xf32>
    %137 = arith.subf %132, %136 : vector<8x128xf32>
    %c0_52 = arith.constant 0 : index
    %c0_53 = arith.constant 0 : index
    %138 = vector.load %arg10[%c0_52, %c0_53] : memref<8x128xf32, #tpu.memory_space<vmem>>, vector<8x128xf32>
    tpu.vector_store %arg10[%c0_52, %c0_53], %137 {strides = array<i32>} : memref<8x128xf32, #tpu.memory_space<vmem>>, vector<8x128xf32>,
    return
  }
  func.func @transform_0(%arg0: i32) -> (i32, i32, i32) {
    %c0_i32 = arith.constant 0 : i32
    %c0_i32_0 = arith.constant 0 : i32
    %c0_i32_1 = arith.constant 0 : i32
    return %arg0, %c0_i32, %c0_i32_0 : i32, i32, i32
  }
  func.func @transform_1(%arg0: i32) -> (i32, i32) {
    %c0_i32 = arith.constant 0 : i32
    %c0_i32_0 = arith.constant 0 : i32
    %c0_i32_1 = arith.constant 0 : i32
    return %c0_i32, %c0_i32_0 : i32, i32
  }
  func.func @transform_2(%arg0: i32) -> (i32, i32) {
    %c0_i32 = arith.constant 0 : i32
    %c0_i32_0 = arith.constant 0 : i32
    %c0_i32_1 = arith.constant 0 : i32
    return %c0_i32, %c0_i32_0 : i32, i32
  }
  func.func @transform_3(%arg0: i32) -> (i32, i32, i32) {
    %c0_i32 = arith.constant 0 : i32
    %c0_i32_0 = arith.constant 0 : i32
    %c0_i32_1 = arith.constant 0 : i32
    %c0_i32_2 = arith.constant 0 : i32
    return %c0_i32, %c0_i32_0, %c0_i32_1 : i32, i32, i32
  }
  func.func @transform_4(%arg0: i32) -> (i32, i32) {
    %c0_i32 = arith.constant 0 : i32
    %c0_i32_0 = arith.constant 0 : i32
    %c0_i32_1 = arith.constant 0 : i32
    return %c0_i32, %c0_i32_0 : i32, i32
  }
  func.func @transform_5(%arg0: i32) -> (i32, i32, i32) {
    %c0_i32 = arith.constant 0 : i32
    %c0_i32_0 = arith.constant 0 : i32
    %c0_i32_1 = arith.constant 0 : i32
    %c0_i32_2 = arith.constant 0 : i32
    return %c0_i32, %c0_i32_0, %c0_i32_1 : i32, i32, i32
  }
  func.func @transform_6(%arg0: i32) -> (i32, i32) {
    %c0_i32 = arith.constant 0 : i32
    %c0_i32_0 = arith.constant 0 : i32
    %c0_i32_1 = arith.constant 0 : i32
    return %c0_i32, %c0_i32_0 : i32, i32
  }
  func.func @transform_7(%arg0: i32) -> (i32, i32) {
    %c0_i32 = arith.constant 0 : i32
    %c0_i32_0 = arith.constant 0 : i32
    %c0_i32_1 = arith.constant 0 : i32
    return %c0_i32, %c0_i32_0 : i32, i32
  }
  func.func @transform_8(%arg0: i32) -> (i32, i32) {
    %c0_i32 = arith.constant 0 : i32
    %c0_i32_0 = arith.constant 0 : i32
    %c0_i32_1 = arith.constant 0 : i32
    return %c0_i32, %c0_i32_0 : i32, i32
  }
  func.func @transform_9(%arg0: i32) -> (i32, i32) {
    %c0_i32 = arith.constant 0 : i32
    %c0_i32_0 = arith.constant 0 : i32
    return %arg0, %c0_i32 : i32, i32
  }
}

</mosaic_0001>

<llo_original>
// kernel: cnn_mnist_forward.1
$region0: #{cnn_mnist_forward.1}
  #allocation0 [shape = 'u32[]', space=smem, size = 0x4, offset = 0x4, fixed_abs, tag = 'smem constant byte address 0x4 - core index']
  #allocation1 [shape = 'u32[144,128]{1,0:T(1,128)}', space=vmem, size = 0x12000, scoped, tag = 'internal scratch']
  %s0 = inlined_call_operand.vmem [shape: bf16[1,192,160], index: 0, kind: input, shape index: {}]
  %s1 = inlined_call_operand.vmem [shape: bf16[160,256], index: 1, kind: input, shape index: {}]
  %s2 = inlined_call_operand.vmem [shape: f32[1,256], index: 2, kind: input, shape index: {}]
  %s3 = inlined_call_operand.vmem [shape: bf16[5,128,256], index: 3, kind: input, shape index: {}]
  %s4 = inlined_call_operand.vmem [shape: f32[1,256], index: 4, kind: input, shape index: {}]
  %s5 = inlined_call_operand.vmem [shape: bf16[4,128,50], index: 5, kind: input, shape index: {}]
  %s6 = inlined_call_operand.vmem [shape: f32[1,50], index: 6, kind: input, shape index: {}]
  %s7 = inlined_call_operand.vmem [shape: bf16[50,128], index: 7, kind: input, shape index: {}]
  %s8 = inlined_call_operand.vmem [shape: f32[1,128], index: 8, kind: input, shape index: {}]
  %s9 = inlined_call_operand.vmem [shape: f32[8,128], index: 9, kind: output, shape index: {}]
  %s10 = sld [smem:[#allocation0]]
  $region46: #{cnn_mnist_forward.1} parent=0
    _
  %s12 = ssub.s32 1, %s10
  %s13 = scalar_select 0, %s12, %s10
  // Predicated region
  $region2: #{cnn_mnist_forward.1} parent=0 // pred_check
    _
  $region3: #{cnn_mnist_forward.1} parent=0 // pred_check_branch
    %15 = sbr.rel (0) target = $region5
  $region4: #{cnn_mnist_forward.1} parent=0 // pred_region
    _
  $region5: #{cnn_mnist_forward.1} parent=0 // pred_fallthru
    _
  // Predicated region
  $region6: #{cnn_mnist_forward.1} parent=0 // pred_check
    _
  $region7: #{cnn_mnist_forward.1} parent=0 // pred_check_branch
    %17 = sbr.rel (0) target = $region9
  $region8: #{cnn_mnist_forward.1} parent=0 // pred_region
    _
  $region9: #{cnn_mnist_forward.1} parent=0 // pred_fallthru
    _
  // Predicated region
  $region10: #{cnn_mnist_forward.1} parent=0 // pred_check
    _
  $region11: #{cnn_mnist_forward.1} parent=0 // pred_check_branch
    %19 = sbr.rel (0) target = $region13
  $region12: #{cnn_mnist_forward.1} parent=0 // pred_region
    _
  $region13: #{cnn_mnist_forward.1} parent=0 // pred_fallthru
    _
  // Predicated region
  $region14: #{cnn_mnist_forward.1} parent=0 // pred_check
    _
  $region15: #{cnn_mnist_forward.1} parent=0 // pred_check_branch
    %21 = sbr.rel (0) target = $region17
  $region16: #{cnn_mnist_forward.1} parent=0 // pred_region
    _
  $region17: #{cnn_mnist_forward.1} parent=0 // pred_fallthru
    _
  // Predicated region
  $region18: #{cnn_mnist_forward.1} parent=0 // pred_check
    _
  $region19: #{cnn_mnist_forward.1} parent=0 // pred_check_branch
    %23 = sbr.rel (0) target = $region21
  $region20: #{cnn_mnist_forward.1} parent=0 // pred_region
    _
  $region21: #{cnn_mnist_forward.1} parent=0 // pred_fallthru
    _
  // Predicated region
  $region22: #{cnn_mnist_forward.1} parent=0 // pred_check
    _
  $region23: #{cnn_mnist_forward.1} parent=0 // pred_check_branch
    %25 = sbr.rel (0) target = $region25
  $region24: #{cnn_mnist_forward.1} parent=0 // pred_region
    _
  $region25: #{cnn_mnist_forward.1} parent=0 // pred_fallthru
    _
  // Predicated region
  $region26: #{cnn_mnist_forward.1} parent=0 // pred_check
    _
  $region27: #{cnn_mnist_forward.1} parent=0 // pred_check_branch
    %27 = sbr.rel (0) target = $region29
  $region28: #{cnn_mnist_forward.1} parent=0 // pred_region
    _
  $region29: #{cnn_mnist_forward.1} parent=0 // pred_fallthru
    _
  // Predicated region
  $region30: #{cnn_mnist_forward.1} parent=0 // pred_check
    _
  $region31: #{cnn_mnist_forward.1} parent=0 // pred_check_branch
    %29 = sbr.rel (0) target = $region33
  $region32: #{cnn_mnist_forward.1} parent=0 // pred_region
    _
  $region33: #{cnn_mnist_forward.1} parent=0 // pred_fallthru
    _
  // Predicated region
  $region34: #{cnn_mnist_forward.1} parent=0 // pred_check
    _
  $region35: #{cnn_mnist_forward.1} parent=0 // pred_check_branch
    %31 = sbr.rel (0) target = $region37
  $region36: #{cnn_mnist_forward.1} parent=0 // pred_region
    _
  $region37: #{cnn_mnist_forward.1} parent=0 // pred_fallthru
    _
  %v33 = vld [vmem:[%s0] sm:$0xff]
  %v34 = vld [vmem:[%s0 + $0x8] sm:$0xff]
  %v35 = vld [vmem:[%s0 + $0x10] sm:$0xff]
  %v36 = vld [vmem:[%s0 + $0x18] sm:$0xff]
  %v37 = vld [vmem:[%s0 + $0x20] sm:$0xff]
  %v38 = vld [vmem:[%s0 + $0x28] sm:$0xff]
  %v39 = vld [vmem:[%s0 + $0x30] sm:$0xff]
  %v40 = vld [vmem:[%s0 + $0x38] sm:$0xff]
  %v41 = vld [vmem:[%s0 + $0x40] sm:$0xff]
  %v42 = vld [vmem:[%s0 + $0x48] sm:$0xff]
  %v43 = vld [vmem:[%s0 + $0x50] sm:$0xff]
  %v44 = vld [vmem:[%s0 + $0x58] sm:$0xff]
  %v45 = vld [vmem:[%s0 + $0x60] sm:$0xff]
  %v46 = vld [vmem:[%s0 + $0x68] sm:$0xff]
  %v47 = vld [vmem:[%s0 + $0x70] sm:$0xff]
  %v48 = vld [vmem:[%s0 + $0x78] sm:$0xff]
  %v49 = vld [vmem:[%s0 + $0x80] sm:$0xff]
  %v50 = vld [vmem:[%s0 + $0x88] sm:$0xff]
  %v51 = vld [vmem:[%s0 + $0x90] sm:$0xff]
  %v52 = vld [vmem:[%s0 + $0x98] sm:$0xff]
  %v53 = vld [vmem:[%s0 + $0xa0] sm:$0xff]
  %v54 = vld [vmem:[%s0 + $0xa8] sm:$0xff]
  %v55 = vld [vmem:[%s0 + $0xb0] sm:$0xff]
  %v56 = vld [vmem:[%s0 + $0xb8] sm:$0xff]
  %v57 = vld [vmem:[%s1] sm:$0xff]
  %v58 = vld [vmem:[%s1 + $0x8] sm:$0xff]
  %v59 = vld [vmem:[%s1 + $0x10] sm:$0xff]
  %v60 = vld [vmem:[%s1 + $0x18] sm:$0xff]
  %v61 = vld [vmem:[%s1 + $0x20] sm:$0xff]
  %v62 = vld [vmem:[%s1 + $0x28] sm:$0xff]
  %v63 = vld [vmem:[%s1 + $0x30] sm:$0xff]
  %v64 = vld [vmem:[%s1 + $0x38] sm:$0xff]
  %v65 = vld [vmem:[%s1 + $0x40] sm:$0xff]
  %v66 = vld [vmem:[%s1 + $0x48] sm:$0xff]
  %v67 = vld [vmem:[%s1 + $0x50] sm:$0xff]
  %v68 = vld [vmem:[%s1 + $0x58] sm:$0xff]
  %v69 = vld [vmem:[%s1 + $0x60] sm:$0xff]
  %v70 = vld [vmem:[%s1 + $0x68] sm:$0xff]
  %v71 = vld [vmem:[%s1 + $0x70] sm:$0xff]
  %v72 = vld [vmem:[%s1 + $0x78] sm:$0xff]
  %v73 = vld [vmem:[%s1 + $0x80] sm:$0xff]
  %v74 = vld [vmem:[%s1 + $0x88] sm:$0xff]
  %v75 = vld [vmem:[%s1 + $0x90] sm:$0xff]
  %v76 = vld [vmem:[%s1 + $0x98] sm:$0xff]
  %v77 = vld [vmem:[%s2] sm:$0x3]
  %v79 = vlaneseq
  %v80 = vshrl.u32 %v79, 7
  %v81 = vsub.s32 0, %v80
  %v82 = vrot.slane %v77, %v81
  %v83 = vlaneseq
  %v84 = vshrl.u32 %v83, 7
  %v85 = vsub.s32 1, %v84
  %v86 = vrot.slane %v77, %v85
  %v113 = vunpack.c.l.b16 %v33
  %v114 = vunpack.c.h.b16 %v33
  %v115 = vunpack.c.l.b16 %v34
  %v116 = vunpack.c.h.b16 %v34
  %v117 = vunpack.c.l.b16 %v35
  %v118 = vunpack.c.h.b16 %v35
  %v119 = vunpack.c.l.b16 %v36
  %v120 = vunpack.c.h.b16 %v36
  %v121 = vunpack.c.l.b16 %v37
  %v122 = vunpack.c.h.b16 %v37
  %v123 = vunpack.c.l.b16 %v38
  %v124 = vunpack.c.h.b16 %v38
  %v125 = vunpack.c.l.b16 %v39
  %v126 = vunpack.c.h.b16 %v39
  %v127 = vunpack.c.l.b16 %v40
  %v128 = vunpack.c.h.b16 %v40
  %v129 = vunpack.c.l.b16 %v41
  %v130 = vunpack.c.h.b16 %v41
  %v131 = vunpack.c.l.b16 %v42
  %v132 = vunpack.c.h.b16 %v42
  %v133 = vunpack.c.l.b16 %v43
  %v134 = vunpack.c.h.b16 %v43
  %v135 = vunpack.c.l.b16 %v44
  %v136 = vunpack.c.h.b16 %v44
  %v137 = vunpack.c.l.b16 %v45
  %v138 = vunpack.c.h.b16 %v45
  %v139 = vunpack.c.l.b16 %v46
  %v140 = vunpack.c.h.b16 %v46
  %v141 = vunpack.c.l.b16 %v47
  %v142 = vunpack.c.h.b16 %v47
  %v143 = vunpack.c.l.b16 %v48
  %v144 = vunpack.c.h.b16 %v48
  %v145 = vunpack.c.l.b16 %v49
  %v146 = vunpack.c.h.b16 %v49
  %v147 = vunpack.c.l.b16 %v50
  %v148 = vunpack.c.h.b16 %v50
  %v149 = vunpack.c.l.b16 %v51
  %v150 = vunpack.c.h.b16 %v51
  %v151 = vunpack.c.l.b16 %v52
  %v152 = vunpack.c.h.b16 %v52
  %v153 = vunpack.c.l.b16 %v53
  %v154 = vunpack.c.h.b16 %v53
  %v155 = vunpack.c.l.b16 %v54
  %v156 = vunpack.c.h.b16 %v54
  %v157 = vunpack.c.l.b16 %v55
  %v158 = vunpack.c.h.b16 %v55
  %v159 = vunpack.c.l.b16 %v56
  %v160 = vunpack.c.h.b16 %v56
  %v161 = vpack.c.b16 %v115, %v113
  %v162 = vpack.c.b16 %v116, %v114
  %v163 = vpack.c.b16 %v119, %v117
  %v164 = vpack.c.b16 %v120, %v118
  %v165 = vpack.c.b16 %v123, %v121
  %v166 = vpack.c.b16 %v124, %v122
  %v167 = vpack.c.b16 %v127, %v125
  %v168 = vpack.c.b16 %v128, %v126
  %v169 = vpack.c.b16 %v131, %v129
  %v170 = vpack.c.b16 %v132, %v130
  %v171 = vpack.c.b16 %v135, %v133
  %v172 = vpack.c.b16 %v136, %v134
  %v173 = vpack.c.b16 %v139, %v137
  %v174 = vpack.c.b16 %v140, %v138
  %v175 = vpack.c.b16 %v143, %v141
  %v176 = vpack.c.b16 %v144, %v142
  %v177 = vpack.c.b16 %v147, %v145
  %v178 = vpack.c.b16 %v148, %v146
  %v179 = vpack.c.b16 %v151, %v149
  %v180 = vpack.c.b16 %v152, %v150
  %v181 = vpack.c.b16 %v155, %v153
  %v182 = vpack.c.b16 %v156, %v154
  %v183 = vpack.c.b16 %v159, %v157
  %v184 = vpack.c.b16 %v160, %v158
  %v217 = vunpack.c.l.b16 %v57
  %v218 = vunpack.c.h.b16 %v57
  %v219 = vunpack.c.l.b16 %v58
  %v220 = vunpack.c.h.b16 %v58
  %v221 = vunpack.c.l.b16 %v59
  %v222 = vunpack.c.h.b16 %v59
  %v223 = vunpack.c.l.b16 %v60
  %v224 = vunpack.c.h.b16 %v60
  %v225 = vunpack.c.l.b16 %v61
  %v226 = vunpack.c.h.b16 %v61
  %v227 = vunpack.c.l.b16 %v62
  %v228 = vunpack.c.h.b16 %v62
  %v229 = vunpack.c.l.b16 %v63
  %v230 = vunpack.c.h.b16 %v63
  %v231 = vunpack.c.l.b16 %v64
  %v232 = vunpack.c.h.b16 %v64
  %v233 = vunpack.c.l.b16 %v65
  %v234 = vunpack.c.h.b16 %v65
  %v235 = vunpack.c.l.b16 %v66
  %v236 = vunpack.c.h.b16 %v66
  %v237 = vunpack.c.l.b16 %v67
  %v238 = vunpack.c.h.b16 %v67
  %v239 = vunpack.c.l.b16 %v68
  %v240 = vunpack.c.h.b16 %v68
  %v241 = vunpack.c.l.b16 %v69
  %v242 = vunpack.c.h.b16 %v69
  %v243 = vunpack.c.l.b16 %v70
  %v244 = vunpack.c.h.b16 %v70
  %v245 = vunpack.c.l.b16 %v71
  %v246 = vunpack.c.h.b16 %v71
  %v247 = vunpack.c.l.b16 %v72
  %v248 = vunpack.c.h.b16 %v72
  %v249 = vunpack.c.l.b16 %v73
  %v250 = vunpack.c.h.b16 %v73
  %v251 = vunpack.c.l.b16 %v74
  %v252 = vunpack.c.h.b16 %v74
  %v253 = vunpack.c.l.b16 %v75
  %v254 = vunpack.c.h.b16 %v75
  %v255 = vunpack.c.l.b16 %v76
  %v256 = vunpack.c.h.b16 %v76
  %v257 = vpack.c.b16 %v219, %v217
  %v258 = vpack.c.b16 %v220, %v218
  %v259 = vpack.c.b16 %v223, %v221
  %v260 = vpack.c.b16 %v224, %v222
  %v261 = vpack.c.b16 %v227, %v225
  %v262 = vpack.c.b16 %v228, %v226
  %v263 = vpack.c.b16 %v231, %v229
  %v264 = vpack.c.b16 %v232, %v230
  %v265 = vpack.c.b16 %v235, %v233
  %v266 = vpack.c.b16 %v236, %v234
  %v267 = vpack.c.b16 %v239, %v237
  %v268 = vpack.c.b16 %v240, %v238
  %v269 = vpack.c.b16 %v243, %v241
  %v270 = vpack.c.b16 %v244, %v242
  %v271 = vpack.c.b16 %v247, %v245
  %v272 = vpack.c.b16 %v248, %v246
  %v273 = vpack.c.b16 %v251, %v249
  %v274 = vpack.c.b16 %v252, %v250
  %v275 = vpack.c.b16 %v255, %v253
  %v276 = vpack.c.b16 %v256, %v254
  %vm297 = vcmask 261120
  %v299 = vsel %vm297, %v162, 0
  %v302 = vsel %vm297, %v164, 0
  %v305 = vsel %vm297, %v166, 0
  %v308 = vsel %vm297, %v168, 0
  %v311 = vsel %vm297, %v170, 0
  %v314 = vsel %vm297, %v172, 0
  %v317 = vsel %vm297, %v174, 0
  %v320 = vsel %vm297, %v176, 0
  %v323 = vsel %vm297, %v178, 0
  %v326 = vsel %vm297, %v180, 0
  %v329 = vsel %vm297, %v182, 0
  %v332 = vsel %vm297, %v184, 0
  %334 = vmatprep.subr.bf16.mxu0 %v258
  %335 = vmatpush1.bf16.msra.mxu0 %v257
  %336 = vmatprep.subr.bf16.mxu0 %v260
  %337 = vmatpush1.bf16.msra.mxu0 %v259
  %338 = vmatprep.subr.bf16.mxu0 %v262
  %339 = vmatpush1.bf16.msra.mxu0 %v261
  %340 = vmatprep.subr.bf16.mxu0 %v264
  %341 = vmatpush1.bf16.msra.mxu0 %v263
  %342 = vmatprep.subr.bf16.mxu0 %v266
  %343 = vmatpush1.bf16.msra.mxu0 %v265
  %344 = vmatprep.subr.bf16.mxu0 %v268
  %345 = vmatpush1.bf16.msra.mxu0 %v267
  %346 = vmatprep.subr.bf16.mxu0 %v270
  %347 = vmatpush1.bf16.msra.mxu0 %v269
  %348 = vmatprep.subr.bf16.mxu0 %v272
  %349 = vmatpush1.bf16.msra.mxu0 %v271
  %350 = vmatprep.subr.bf16.mxu0 %v274
  %351 = vmatpush1.bf16.msra.mxu0 %v273
  %352 = vmatprep.subr.bf16.mxu0 %v276
  %353 = vmatpush1.bf16.msra.mxu0 %v275
  %354 = vmatprep.subr.bf16.mxu0 0
  %355 = vmatpush1.bf16.msra.mxu0 0
  %356 = vmatprep.subr.bf16.mxu0 0
  %357 = vmatpush1.bf16.msra.mxu0 0
  %358 = vmatprep.subr.bf16.mxu0 0
  %359 = vmatpush1.bf16.msra.mxu0 0
  %360 = vmatprep.subr.bf16.mxu0 0
  %361 = vmatpush1.bf16.msra.mxu0 0
  %362 = vmatprep.subr.bf16.mxu0 0
  %363 = vmatpush1.bf16.msra.mxu0 0
  %364 = vmatprep.subr.bf16.mxu0 0
  %365 = vmatpush1.bf16.msra.mxu0 0
  %366 = vmatprep.mubr.bf16.mxu0 %v299
  %367 = vmatmul.mubr.bf16.gmra.mrb[0].mxu0 %v161
  %v368 = vpop.f32.mrb[0].mxu0
  %v369 = vadd.f32 %v82, %v368
  %v370 = vpop.f32.mrb[0].mxu0
  %v371 = vadd.f32 %v86, %v370
  %v372 = vpop.f32.mrb[0].mxu0
  %v373 = vadd.f32 %v82, %v372
  %v374 = vpop.f32.mrb[0].mxu0
  %v375 = vadd.f32 %v86, %v374
  %376 = vmatprep.mubr.bf16.mxu0 %v302
  %377 = vmatmul.mubr.bf16.gmra.mrb[0].mxu0 %v163
  %v378 = vpop.f32.mrb[0].mxu0
  %v379 = vadd.f32 %v82, %v378
  %v380 = vpop.f32.mrb[0].mxu0
  %v381 = vadd.f32 %v86, %v380
  %v382 = vpop.f32.mrb[0].mxu0
  %v383 = vadd.f32 %v82, %v382
  %v384 = vpop.f32.mrb[0].mxu0
  %v385 = vadd.f32 %v86, %v384
  %386 = vmatprep.mubr.bf16.mxu0 %v305
  %387 = vmatmul.mubr.bf16.gmra.mrb[0].mxu0 %v165
  %v388 = vpop.f32.mrb[0].mxu0
  %v389 = vadd.f32 %v82, %v388
  %v390 = vpop.f32.mrb[0].mxu0
  %v391 = vadd.f32 %v86, %v390
  %v392 = vpop.f32.mrb[0].mxu0
  %v393 = vadd.f32 %v82, %v392
  %v394 = vpop.f32.mrb[0].mxu0
  %v395 = vadd.f32 %v86, %v394
  %396 = vmatprep.mubr.bf16.mxu0 %v308
  %397 = vmatmul.mubr.bf16.gmra.mrb[0].mxu0 %v167
  %v398 = vpop.f32.mrb[0].mxu0
  %v399 = vadd.f32 %v82, %v398
  %v400 = vpop.f32.mrb[0].mxu0
  %v401 = vadd.f32 %v86, %v400
  %v402 = vpop.f32.mrb[0].mxu0
  %v403 = vadd.f32 %v82, %v402
  %v404 = vpop.f32.mrb[0].mxu0
  %v405 = vadd.f32 %v86, %v404
  %406 = vmatprep.mubr.bf16.mxu0 %v311
  %407 = vmatmul.mubr.bf16.gmra.mrb[0].mxu0 %v169
  %v408 = vpop.f32.mrb[0].mxu0
  %v409 = vadd.f32 %v82, %v408
  %v410 = vpop.f32.mrb[0].mxu0
  %v411 = vadd.f32 %v86, %v410
  %v412 = vpop.f32.mrb[0].mxu0
  %v413 = vadd.f32 %v82, %v412
  %v414 = vpop.f32.mrb[0].mxu0
  %v415 = vadd.f32 %v86, %v414
  %416 = vmatprep.mubr.bf16.mxu0 %v314
  %417 = vmatmul.mubr.bf16.gmra.mrb[0].mxu0 %v171
  %v418 = vpop.f32.mrb[0].mxu0
  %v419 = vadd.f32 %v82, %v418
  %v420 = vpop.f32.mrb[0].mxu0
  %v421 = vadd.f32 %v86, %v420
  %v422 = vpop.f32.mrb[0].mxu0
  %v423 = vadd.f32 %v82, %v422
  %v424 = vpop.f32.mrb[0].mxu0
  %v425 = vadd.f32 %v86, %v424
  %426 = vmatprep.mubr.bf16.mxu0 %v317
  %427 = vmatmul.mubr.bf16.gmra.mrb[0].mxu0 %v173
  %v428 = vpop.f32.mrb[0].mxu0
  %v429 = vadd.f32 %v82, %v428
  %v430 = vpop.f32.mrb[0].mxu0
  %v431 = vadd.f32 %v86, %v430
  %v432 = vpop.f32.mrb[0].mxu0
  %v433 = vadd.f32 %v82, %v432
  %v434 = vpop.f32.mrb[0].mxu0
  %v435 = vadd.f32 %v86, %v434
  %436 = vmatprep.mubr.bf16.mxu0 %v320
  %437 = vmatmul.mubr.bf16.gmra.mrb[0].mxu0 %v175
  %v438 = vpop.f32.mrb[0].mxu0
  %v439 = vadd.f32 %v82, %v438
  %v440 = vpop.f32.mrb[0].mxu0
  %v441 = vadd.f32 %v86, %v440
  %v442 = vpop.f32.mrb[0].mxu0
  %v443 = vadd.f32 %v82, %v442
  %v444 = vpop.f32.mrb[0].mxu0
  %v445 = vadd.f32 %v86, %v444
  %446 = vmatprep.mubr.bf16.mxu0 %v323
  %447 = vmatmul.mubr.bf16.gmra.mrb[0].mxu0 %v177
  %v448 = vpop.f32.mrb[0].mxu0
  %v449 = vadd.f32 %v82, %v448
  %v450 = vpop.f32.mrb[0].mxu0
  %v451 = vadd.f32 %v86, %v450
  %v452 = vpop.f32.mrb[0].mxu0
  %v453 = vadd.f32 %v82, %v452
  %v454 = vpop.f32.mrb[0].mxu0
  %v455 = vadd.f32 %v86, %v454
  %456 = vmatprep.mubr.bf16.mxu0 %v326
  %457 = vmatmul.mubr.bf16.gmra.mrb[0].mxu0 %v179
  %v458 = vpop.f32.mrb[0].mxu0
  %v459 = vadd.f32 %v82, %v458
  %v460 = vpop.f32.mrb[0].mxu0
  %v461 = vadd.f32 %v86, %v460
  %v462 = vpop.f32.mrb[0].mxu0
  %v463 = vadd.f32 %v82, %v462
  %v464 = vpop.f32.mrb[0].mxu0
  %v465 = vadd.f32 %v86, %v464
  %466 = vmatprep.mubr.bf16.mxu0 %v329
  %467 = vmatmul.mubr.bf16.gmra.mrb[0].mxu0 %v181
  %v468 = vpop.f32.mrb[0].mxu0
  %v469 = vadd.f32 %v82, %v468
  %v470 = vpop.f32.mrb[0].mxu0
  %v471 = vadd.f32 %v86, %v470
  %v472 = vpop.f32.mrb[0].mxu0
  %v473 = vadd.f32 %v82, %v472
  %v474 = vpop.f32.mrb[0].mxu0
  %v475 = vadd.f32 %v86, %v474
  %476 = vmatprep.mubr.bf16.mxu0 %v332
  %477 = vmatmul.mubr.bf16.gmra.mrb[0].mxu0 %v183
  %v478 = vpop.f32.mrb[0].mxu0
  %v479 = vadd.f32 %v82, %v478
  %v480 = vpop.f32.mrb[0].mxu0
  %v481 = vadd.f32 %v86, %v480
  %v482 = vpop.f32.mrb[0].mxu0
  %v483 = vadd.f32 %v82, %v482
  %v484 = vpop.f32.mrb[0].mxu0
  %v485 = vadd.f32 %v86, %v484
  %486 = vdwg.mxu0
  %v487 = vmax.f32 %v369, %v373
  %v488 = vmax.f32 %v371, %v375
  %v489 = vmax.f32 %v379, %v383
  %v490 = vmax.f32 %v381, %v385
  %v491 = vmax.f32 %v389, %v393
  %v492 = vmax.f32 %v391, %v395
  %v493 = vmax.f32 %v399, %v403
  %v494 = vmax.f32 %v401, %v405
  %v495 = vmax.f32 %v409, %v413
  %v496 = vmax.f32 %v411, %v415
  %v497 = vmax.f32 %v419, %v423
  %v498 = vmax.f32 %v421, %v425
  %v499 = vmax.f32 %v429, %v433
  %v500 = vmax.f32 %v431, %v435
  %v501 = vmax.f32 %v439, %v443
  %v502 = vmax.f32 %v441, %v445
  %v503 = vmax.f32 %v449, %v453
  %v504 = vmax.f32 %v451, %v455
  %v505 = vmax.f32 %v459, %v463
  %v506 = vmax.f32 %v461, %v465
  %v507 = vmax.f32 %v469, %v473
  %v508 = vmax.f32 %v471, %v475
  %v509 = vmax.f32 %v479, %v483
  %v510 = vmax.f32 %v481, %v485
  %v511 = vmax.f32 %v487, %v488
  %v512 = vmax.f32 %v489, %v490
  %v513 = vmax.f32 %v491, %v492
  %v514 = vmax.f32 %v493, %v494
  %v515 = vmax.f32 %v495, %v496
  %v516 = vmax.f32 %v497, %v498
  %v517 = vmax.f32 %v499, %v500
  %v518 = vmax.f32 %v501, %v502
  %v519 = vmax.f32 %v503, %v504
  %v520 = vmax.f32 %v505, %v506
  %v521 = vmax.f32 %v507, %v508
  %v522 = vmax.f32 %v509, %v510
  %v523 = vmax.f32 %v511, 0.0
  %v524 = vmax.f32 %v512, 0.0
  %v525 = vmax.f32 %v513, 0.0
  %v526 = vmax.f32 %v514, 0.0
  %v527 = vmax.f32 %v515, 0.0
  %v528 = vmax.f32 %v516, 0.0
  %v529 = vmax.f32 %v517, 0.0
  %v530 = vmax.f32 %v518, 0.0
  %v531 = vmax.f32 %v519, 0.0
  %v532 = vmax.f32 %v520, 0.0
  %v533 = vmax.f32 %v521, 0.0
  %v534 = vmax.f32 %v522, 0.0
  %v535 = vpack.c.bf16 %v524, %v523
  %v536 = vpack.c.bf16 %v526, %v525
  %v537 = vpack.c.bf16 %v528, %v527
  %v538 = vpack.c.bf16 %v530, %v529
  %v539 = vpack.c.bf16 %v532, %v531
  %v540 = vpack.c.bf16 %v534, %v533
  %v541 = vld [vmem:[%s3] sm:$0xff]
  %v542 = vld [vmem:[%s3 + $0x8] sm:$0xff]
  %v543 = vld [vmem:[%s3 + $0x10] sm:$0xff]
  %v544 = vld [vmem:[%s3 + $0x18] sm:$0xff]
  %v545 = vld [vmem:[%s3 + $0x20] sm:$0xff]
  %v546 = vld [vmem:[%s3 + $0x28] sm:$0xff]
  %v547 = vld [vmem:[%s3 + $0x30] sm:$0xff]
  %v548 = vld [vmem:[%s3 + $0x38] sm:$0xff]
  %v549 = vld [vmem:[%s3 + $0x40] sm:$0xff]
  %v550 = vld [vmem:[%s3 + $0x48] sm:$0xff]
  %v551 = vld [vmem:[%s3 + $0x50] sm:$0xff]
  %v552 = vld [vmem:[%s3 + $0x58] sm:$0xff]
  %v553 = vld [vmem:[%s3 + $0x60] sm:$0xff]
  %v554 = vld [vmem:[%s3 + $0x68] sm:$0xff]
  %v555 = vld [vmem:[%s3 + $0x70] sm:$0xff]
  %v556 = vld [vmem:[%s3 + $0x78] sm:$0xff]
  %s557 = scalar_lea.vmem %s3, 128
  %v558 = vld [vmem:[%s557] sm:$0xff]
  %v559 = vld [vmem:[%s557 + $0x8] sm:$0xff]
  %v560 = vld [vmem:[%s557 + $0x10] sm:$0xff]
  %v561 = vld [vmem:[%s557 + $0x18] sm:$0xff]
  %v562 = vld [vmem:[%s557 + $0x20] sm:$0xff]
  %v563 = vld [vmem:[%s557 + $0x28] sm:$0xff]
  %v564 = vld [vmem:[%s557 + $0x30] sm:$0xff]
  %v565 = vld [vmem:[%s557 + $0x38] sm:$0xff]
  %v566 = vld [vmem:[%s557 + $0x40] sm:$0xff]
  %v567 = vld [vmem:[%s557 + $0x48] sm:$0xff]
  %v568 = vld [vmem:[%s557 + $0x50] sm:$0xff]
  %v569 = vld [vmem:[%s557 + $0x58] sm:$0xff]
  %v570 = vld [vmem:[%s557 + $0x60] sm:$0xff]
  %v571 = vld [vmem:[%s557 + $0x68] sm:$0xff]
  %v572 = vld [vmem:[%s557 + $0x70] sm:$0xff]
  %v573 = vld [vmem:[%s557 + $0x78] sm:$0xff]
  %vm579 = vcmask 1043456
  %v580 = vrot.slane %v535, 4
  %v581 = vrot.slane %v536, 4
  %v582 = vsel %vm579, %v580, %v581
  %v583 = vrot.slane %v537, 4
  %v584 = vsel %vm579, %v581, %v583
  %v585 = vrot.slane %v538, 4
  %v586 = vsel %vm579, %v583, %v585
  %v587 = vrot.slane %v539, 4
  %v588 = vsel %vm579, %v585, %v587
  %v609 = vunpack.c.l.b16 %v558
  %v610 = vunpack.c.h.b16 %v558
  %v611 = vunpack.c.l.b16 %v559
  %v612 = vunpack.c.h.b16 %v559
  %v613 = vunpack.c.l.b16 %v560
  %v614 = vunpack.c.h.b16 %v560
  %v615 = vunpack.c.l.b16 %v561
  %v616 = vunpack.c.h.b16 %v561
  %v617 = vunpack.c.l.b16 %v562
  %v618 = vunpack.c.h.b16 %v562
  %v619 = vunpack.c.l.b16 %v563
  %v620 = vunpack.c.h.b16 %v563
  %v621 = vunpack.c.l.b16 %v564
  %v622 = vunpack.c.h.b16 %v564
  %v623 = vunpack.c.l.b16 %v565
  %v624 = vunpack.c.h.b16 %v565
  %v625 = vunpack.c.l.b16 %v566
  %v626 = vunpack.c.h.b16 %v566
  %v627 = vunpack.c.l.b16 %v567
  %v628 = vunpack.c.h.b16 %v567
  %v629 = vunpack.c.l.b16 %v568
  %v630 = vunpack.c.h.b16 %v568
  %v631 = vunpack.c.l.b16 %v569
  %v632 = vunpack.c.h.b16 %v569
  %v633 = vunpack.c.l.b16 %v570
  %v634 = vunpack.c.h.b16 %v570
  %v635 = vunpack.c.l.b16 %v571
  %v636 = vunpack.c.h.b16 %v571
  %v637 = vunpack.c.l.b16 %v572
  %v638 = vunpack.c.h.b16 %v572
  %v639 = vunpack.c.l.b16 %v573
  %v640 = vunpack.c.h.b16 %v573
  %v641 = vpack.c.b16 %v611, %v609
  %v642 = vpack.c.b16 %v612, %v610
  %v643 = vpack.c.b16 %v615, %v613
  %v644 = vpack.c.b16 %v616, %v614
  %v645 = vpack.c.b16 %v619, %v617
  %v646 = vpack.c.b16 %v620, %v618
  %v647 = vpack.c.b16 %v623, %v621
  %v648 = vpack.c.b16 %v624, %v622
  %v649 = vpack.c.b16 %v627, %v625
  %v650 = vpack.c.b16 %v628, %v626
  %v651 = vpack.c.b16 %v631, %v629
  %v652 = vpack.c.b16 %v632, %v630
  %v653 = vpack.c.b16 %v635, %v633
  %v654 = vpack.c.b16 %v636, %v634
  %v655 = vpack.c.b16 %v639, %v637
  %v656 = vpack.c.b16 %v640, %v638
  %673 = vmatprep.subr.bf16.mxu0 %v642
  %674 = vmatpush1.bf16.msra.mxu0 %v641
  %675 = vmatprep.subr.bf16.mxu0 %v644
  %676 = vmatpush1.bf16.msra.mxu0 %v643
  %677 = vmatprep.subr.bf16.mxu0 %v646
  %678 = vmatpush1.bf16.msra.mxu0 %v645
  %679 = vmatprep.subr.bf16.mxu0 %v648
  %680 = vmatpush1.bf16.msra.mxu0 %v647
  %681 = vmatprep.subr.bf16.mxu0 %v650
  %682 = vmatpush1.bf16.msra.mxu0 %v649
  %683 = vmatprep.subr.bf16.mxu0 %v652
  %684 = vmatpush1.bf16.msra.mxu0 %v651
  %685 = vmatprep.subr.bf16.mxu0 %v654
  %686 = vmatpush1.bf16.msra.mxu0 %v653
  %687 = vmatprep.subr.bf16.mxu0 %v656
  %688 = vmatpush1.bf16.msra.mxu0 %v655
  %689 = vmatprep.subr.bf16.mxu0 0
  %690 = vmatpush1.bf16.msra.mxu0 0
  %691 = vmatprep.subr.bf16.mxu0 0
  %692 = vmatpush1.bf16.msra.mxu0 0
  %693 = vmatprep.subr.bf16.mxu0 0
  %694 = vmatpush1.bf16.msra.mxu0 0
  %695 = vmatprep.subr.bf16.mxu0 0
  %696 = vmatpush1.bf16.msra.mxu0 0
  %697 = vmatprep.subr.bf16.mxu0 0
  %698 = vmatpush1.bf16.msra.mxu0 0
  %699 = vmatprep.subr.bf16.mxu0 0
  %700 = vmatpush1.bf16.msra.mxu0 0
  %701 = vmatprep.subr.bf16.mxu0 0
  %702 = vmatpush1.bf16.msra.mxu0 0
  %703 = vmatprep.subr.bf16.mxu0 0
  %704 = vmatpush1.bf16.msra.mxu0 0
  %705 = vmatprep.mubr.bf16.mxu0 0
  %706 = vmatmul.mubr.bf16.gmra.mrb[0].mxu0 %v582
  %v707 = vpop.f32.mrb[0].mxu0
  %v708 = vadd.f32 0.0, %v707
  %v709 = vpop.f32.mrb[0].mxu0
  %v710 = vadd.f32 0.0, %v709
  %v711 = vpop.f32.mrb[0].mxu0
  %v712 = vadd.f32 0.0, %v711
  %v713 = vpop.f32.mrb[0].mxu0
  %v714 = vadd.f32 0.0, %v713
  %715 = vmatprep.mubr.bf16.mxu0 0
  %716 = vmatmul.mubr.bf16.gmra.mrb[0].mxu0 %v584
  %v717 = vpop.f32.mrb[0].mxu0
  %v718 = vadd.f32 0.0, %v717
  %v719 = vpop.f32.mrb[0].mxu0
  %v720 = vadd.f32 0.0, %v719
  %v721 = vpop.f32.mrb[0].mxu0
  %v722 = vadd.f32 0.0, %v721
  %v723 = vpop.f32.mrb[0].mxu0
  %v724 = vadd.f32 0.0, %v723
  %725 = vmatprep.mubr.bf16.mxu0 0
  %726 = vmatmul.mubr.bf16.gmra.mrb[0].mxu0 %v586
  %v727 = vpop.f32.mrb[0].mxu0
  %v728 = vadd.f32 0.0, %v727
  %v729 = vpop.f32.mrb[0].mxu0
  %v730 = vadd.f32 0.0, %v729
  %v731 = vpop.f32.mrb[0].mxu0
  %v732 = vadd.f32 0.0, %v731
  %v733 = vpop.f32.mrb[0].mxu0
  %v734 = vadd.f32 0.0, %v733
  %735 = vmatprep.mubr.bf16.mxu0 0
  %736 = vmatmul.mubr.bf16.gmra.mrb[0].mxu0 %v588
  %v737 = vpop.f32.mrb[0].mxu0
  %v738 = vadd.f32 0.0, %v737
  %v739 = vpop.f32.mrb[0].mxu0
  %v740 = vadd.f32 0.0, %v739
  %v741 = vpop.f32.mrb[0].mxu0
  %v742 = vadd.f32 0.0, %v741
  %v743 = vpop.f32.mrb[0].mxu0
  %v744 = vadd.f32 0.0, %v743
  %745 = vdwg.mxu0
  %v762 = vunpack.c.l.b16 %v541
  %v763 = vunpack.c.h.b16 %v541
  %v764 = vunpack.c.l.b16 %v542
  %v765 = vunpack.c.h.b16 %v542
  %v766 = vunpack.c.l.b16 %v543
  %v767 = vunpack.c.h.b16 %v543
  %v768 = vunpack.c.l.b16 %v544
  %v769 = vunpack.c.h.b16 %v544
  %v770 = vunpack.c.l.b16 %v545
  %v771 = vunpack.c.h.b16 %v545
  %v772 = vunpack.c.l.b16 %v546
  %v773 = vunpack.c.h.b16 %v546
  %v774 = vunpack.c.l.b16 %v547
  %v775 = vunpack.c.h.b16 %v547
  %v776 = vunpack.c.l.b16 %v548
  %v777 = vunpack.c.h.b16 %v548
  %v778 = vunpack.c.l.b16 %v549
  %v779 = vunpack.c.h.b16 %v549
  %v780 = vunpack.c.l.b16 %v550
  %v781 = vunpack.c.h.b16 %v550
  %v782 = vunpack.c.l.b16 %v551
  %v783 = vunpack.c.h.b16 %v551
  %v784 = vunpack.c.l.b16 %v552
  %v785 = vunpack.c.h.b16 %v552
  %v786 = vunpack.c.l.b16 %v553
  %v787 = vunpack.c.h.b16 %v553
  %v788 = vunpack.c.l.b16 %v554
  %v789 = vunpack.c.h.b16 %v554
  %v790 = vunpack.c.l.b16 %v555
  %v791 = vunpack.c.h.b16 %v555
  %v792 = vunpack.c.l.b16 %v556
  %v793 = vunpack.c.h.b16 %v556
  %v794 = vpack.c.b16 %v764, %v762
  %v795 = vpack.c.b16 %v765, %v763
  %v796 = vpack.c.b16 %v768, %v766
  %v797 = vpack.c.b16 %v769, %v767
  %v798 = vpack.c.b16 %v772, %v770
  %v799 = vpack.c.b16 %v773, %v771
  %v800 = vpack.c.b16 %v776, %v774
  %v801 = vpack.c.b16 %v777, %v775
  %v802 = vpack.c.b16 %v780, %v778
  %v803 = vpack.c.b16 %v781, %v779
  %v804 = vpack.c.b16 %v784, %v782
  %v805 = vpack.c.b16 %v785, %v783
  %v806 = vpack.c.b16 %v788, %v786
  %v807 = vpack.c.b16 %v789, %v787
  %v808 = vpack.c.b16 %v792, %v790
  %v809 = vpack.c.b16 %v793, %v791
  %826 = vmatprep.subr.bf16.mxu0 %v795
  %827 = vmatpush1.bf16.msra.mxu0 %v794
  %828 = vmatprep.subr.bf16.mxu0 %v797
  %829 = vmatpush1.bf16.msra.mxu0 %v796
  %830 = vmatprep.subr.bf16.mxu0 %v799
  %831 = vmatpush1.bf16.msra.mxu0 %v798
  %832 = vmatprep.subr.bf16.mxu0 %v801
  %833 = vmatpush1.bf16.msra.mxu0 %v800
  %834 = vmatprep.subr.bf16.mxu0 %v803
  %835 = vmatpush1.bf16.msra.mxu0 %v802
  %836 = vmatprep.subr.bf16.mxu0 %v805
  %837 = vmatpush1.bf16.msra.mxu0 %v804
  %838 = vmatprep.subr.bf16.mxu0 %v807
  %839 = vmatpush1.bf16.msra.mxu0 %v806
  %840 = vmatprep.subr.bf16.mxu0 %v809
  %841 = vmatpush1.bf16.msra.mxu0 %v808
  %842 = vmatprep.subr.bf16.mxu0 0
  %843 = vmatpush1.bf16.msra.mxu0 0
  %844 = vmatprep.subr.bf16.mxu0 0
  %845 = vmatpush1.bf16.msra.mxu0 0
  %846 = vmatprep.subr.bf16.mxu0 0
  %847 = vmatpush1.bf16.msra.mxu0 0
  %848 = vmatprep.subr.bf16.mxu0 0
  %849 = vmatpush1.bf16.msra.mxu0 0
  %850 = vmatprep.subr.bf16.mxu0 0
  %851 = vmatpush1.bf16.msra.mxu0 0
  %852 = vmatprep.subr.bf16.mxu0 0
  %853 = vmatpush1.bf16.msra.mxu0 0
  %854 = vmatprep.subr.bf16.mxu0 0
  %855 = vmatpush1.bf16.msra.mxu0 0
  %856 = vmatprep.subr.bf16.mxu0 0
  %857 = vmatpush1.bf16.msra.mxu0 0
  %858 = vmatprep.mubr.bf16.mxu0 0
  %859 = vmatmul.mubr.bf16.gmra.mrb[0].mxu0 %v535
  %v860 = vpop.f32.mrb[0].mxu0
  %v861 = vadd.f32 %v708, %v860
  %v862 = vpop.f32.mrb[0].mxu0
  %v863 = vadd.f32 %v710, %v862
  %v864 = vpop.f32.mrb[0].mxu0
  %v865 = vadd.f32 %v712, %v864
  %v866 = vpop.f32.mrb[0].mxu0
  %v867 = vadd.f32 %v714, %v866
  %868 = vmatprep.mubr.bf16.mxu0 0
  %869 = vmatmul.mubr.bf16.gmra.mrb[0].mxu0 %v536
  %v870 = vpop.f32.mrb[0].mxu0
  %v871 = vadd.f32 %v718, %v870
  %v872 = vpop.f32.mrb[0].mxu0
  %v873 = vadd.f32 %v720, %v872
  %v874 = vpop.f32.mrb[0].mxu0
  %v875 = vadd.f32 %v722, %v874
  %v876 = vpop.f32.mrb[0].mxu0
  %v877 = vadd.f32 %v724, %v876
  %878 = vmatprep.mubr.bf16.mxu0 0
  %879 = vmatmul.mubr.bf16.gmra.mrb[0].mxu0 %v537
  %v880 = vpop.f32.mrb[0].mxu0
  %v881 = vadd.f32 %v728, %v880
  %v882 = vpop.f32.mrb[0].mxu0
  %v883 = vadd.f32 %v730, %v882
  %v884 = vpop.f32.mrb[0].mxu0
  %v885 = vadd.f32 %v732, %v884
  %v886 = vpop.f32.mrb[0].mxu0
  %v887 = vadd.f32 %v734, %v886
  %888 = vmatprep.mubr.bf16.mxu0 0
  %889 = vmatmul.mubr.bf16.gmra.mrb[0].mxu0 %v538
  %v890 = vpop.f32.mrb[0].mxu0
  %v891 = vadd.f32 %v738, %v890
  %v892 = vpop.f32.mrb[0].mxu0
  %v893 = vadd.f32 %v740, %v892
  %v894 = vpop.f32.mrb[0].mxu0
  %v895 = vadd.f32 %v742, %v894
  %v896 = vpop.f32.mrb[0].mxu0
  %v897 = vadd.f32 %v744, %v896
  %898 = vdwg.mxu0
  %s899 = scalar_lea.vmem %s3, 256
  %v900 = vld [vmem:[%s899] sm:$0xff]
  %v901 = vld [vmem:[%s899 + $0x8] sm:$0xff]
  %v902 = vld [vmem:[%s899 + $0x10] sm:$0xff]
  %v903 = vld [vmem:[%s899 + $0x18] sm:$0xff]
  %v904 = vld [vmem:[%s899 + $0x20] sm:$0xff]
  %v905 = vld [vmem:[%s899 + $0x28] sm:$0xff]
  %v906 = vld [vmem:[%s899 + $0x30] sm:$0xff]
  %v907 = vld [vmem:[%s899 + $0x38] sm:$0xff]
  %v908 = vld [vmem:[%s899 + $0x40] sm:$0xff]
  %v909 = vld [vmem:[%s899 + $0x48] sm:$0xff]
  %v910 = vld [vmem:[%s899 + $0x50] sm:$0xff]
  %v911 = vld [vmem:[%s899 + $0x58] sm:$0xff]
  %v912 = vld [vmem:[%s899 + $0x60] sm:$0xff]
  %v913 = vld [vmem:[%s899 + $0x68] sm:$0xff]
  %v914 = vld [vmem:[%s899 + $0x70] sm:$0xff]
  %v915 = vld [vmem:[%s899 + $0x78] sm:$0xff]
  %v932 = vunpack.c.l.b16 %v900
  %v933 = vunpack.c.h.b16 %v900
  %v934 = vunpack.c.l.b16 %v901
  %v935 = vunpack.c.h.b16 %v901
  %v936 = vunpack.c.l.b16 %v902
  %v937 = vunpack.c.h.b16 %v902
  %v938 = vunpack.c.l.b16 %v903
  %v939 = vunpack.c.h.b16 %v903
  %v940 = vunpack.c.l.b16 %v904
  %v941 = vunpack.c.h.b16 %v904
  %v942 = vunpack.c.l.b16 %v905
  %v943 = vunpack.c.h.b16 %v905
  %v944 = vunpack.c.l.b16 %v906
  %v945 = vunpack.c.h.b16 %v906
  %v946 = vunpack.c.l.b16 %v907
  %v947 = vunpack.c.h.b16 %v907
  %v948 = vunpack.c.l.b16 %v908
  %v949 = vunpack.c.h.b16 %v908
  %v950 = vunpack.c.l.b16 %v909
  %v951 = vunpack.c.h.b16 %v909
  %v952 = vunpack.c.l.b16 %v910
  %v953 = vunpack.c.h.b16 %v910
  %v954 = vunpack.c.l.b16 %v911
  %v955 = vunpack.c.h.b16 %v911
  %v956 = vunpack.c.l.b16 %v912
  %v957 = vunpack.c.h.b16 %v912
  %v958 = vunpack.c.l.b16 %v913
  %v959 = vunpack.c.h.b16 %v913
  %v960 = vunpack.c.l.b16 %v914
  %v961 = vunpack.c.h.b16 %v914
  %v962 = vunpack.c.l.b16 %v915
  %v963 = vunpack.c.h.b16 %v915
  %v964 = vpack.c.b16 %v934, %v932
  %v965 = vpack.c.b16 %v935, %v933
  %v966 = vpack.c.b16 %v938, %v936
  %v967 = vpack.c.b16 %v939, %v937
  %v968 = vpack.c.b16 %v942, %v940
  %v969 = vpack.c.b16 %v943, %v941
  %v970 = vpack.c.b16 %v946, %v944
  %v971 = vpack.c.b16 %v947, %v945
  %v972 = vpack.c.b16 %v950, %v948
  %v973 = vpack.c.b16 %v951, %v949
  %v974 = vpack.c.b16 %v954, %v952
  %v975 = vpack.c.b16 %v955, %v953
  %v976 = vpack.c.b16 %v958, %v956
  %v977 = vpack.c.b16 %v959, %v957
  %v978 = vpack.c.b16 %v962, %v960
  %v979 = vpack.c.b16 %v963, %v961
  %996 = vmatprep.subr.bf16.mxu0 %v965
  %997 = vmatpush1.bf16.msra.mxu0 %v964
  %998 = vmatprep.subr.bf16.mxu0 %v967
  %999 = vmatpush1.bf16.msra.mxu0 %v966
  %1000 = vmatprep.subr.bf16.mxu0 %v969
  %1001 = vmatpush1.bf16.msra.mxu0 %v968
  %1002 = vmatprep.subr.bf16.mxu0 %v971
  %1003 = vmatpush1.bf16.msra.mxu0 %v970
  %1004 = vmatprep.subr.bf16.mxu0 %v973
  %1005 = vmatpush1.bf16.msra.mxu0 %v972
  %1006 = vmatprep.subr.bf16.mxu0 %v975
  %1007 = vmatpush1.bf16.msra.mxu0 %v974
  %1008 = vmatprep.subr.bf16.mxu0 %v977
  %1009 = vmatpush1.bf16.msra.mxu0 %v976
  %1010 = vmatprep.subr.bf16.mxu0 %v979
  %1011 = vmatpush1.bf16.msra.mxu0 %v978
  %1012 = vmatprep.subr.bf16.mxu0 0
  %1013 = vmatpush1.bf16.msra.mxu0 0
  %1014 = vmatprep.subr.bf16.mxu0 0
  %1015 = vmatpush1.bf16.msra.mxu0 0
  %1016 = vmatprep.subr.bf16.mxu0 0
  %1017 = vmatpush1.bf16.msra.mxu0 0
  %1018 = vmatprep.subr.bf16.mxu0 0
  %1019 = vmatpush1.bf16.msra.mxu0 0
  %1020 = vmatprep.subr.bf16.mxu0 0
  %1021 = vmatpush1.bf16.msra.mxu0 0
  %1022 = vmatprep.subr.bf16.mxu0 0
  %1023 = vmatpush1.bf16.msra.mxu0 0
  %1024 = vmatprep.subr.bf16.mxu0 0
  %1025 = vmatpush1.bf16.msra.mxu0 0
  %1026 = vmatprep.subr.bf16.mxu0 0
  %1027 = vmatpush1.bf16.msra.mxu0 0
  %1028 = vmatprep.mubr.bf16.mxu0 0
  %1029 = vmatmul.mubr.bf16.gmra.mrb[0].mxu0 %v536
  %v1030 = vpop.f32.mrb[0].mxu0
  %v1031 = vadd.f32 0.0, %v1030
  %v1032 = vpop.f32.mrb[0].mxu0
  %v1033 = vadd.f32 0.0, %v1032
  %v1034 = vpop.f32.mrb[0].mxu0
  %v1035 = vadd.f32 0.0, %v1034
  %v1036 = vpop.f32.mrb[0].mxu0
  %v1037 = vadd.f32 0.0, %v1036
  %1038 = vmatprep.mubr.bf16.mxu0 0
  %1039 = vmatmul.mubr.bf16.gmra.mrb[0].mxu0 %v537
  %v1040 = vpop.f32.mrb[0].mxu0
  %v1041 = vadd.f32 0.0, %v1040
  %v1042 = vpop.f32.mrb[0].mxu0
  %v1043 = vadd.f32 0.0, %v1042
  %v1044 = vpop.f32.mrb[0].mxu0
  %v1045 = vadd.f32 0.0, %v1044
  %v1046 = vpop.f32.mrb[0].mxu0
  %v1047 = vadd.f32 0.0, %v1046
  %1048 = vmatprep.mubr.bf16.mxu0 0
  %1049 = vmatmul.mubr.bf16.gmra.mrb[0].mxu0 %v538
  %v1050 = vpop.f32.mrb[0].mxu0
  %v1051 = vadd.f32 0.0, %v1050
  %v1052 = vpop.f32.mrb[0].mxu0
  %v1053 = vadd.f32 0.0, %v1052
  %v1054 = vpop.f32.mrb[0].mxu0
  %v1055 = vadd.f32 0.0, %v1054
  %v1056 = vpop.f32.mrb[0].mxu0
  %v1057 = vadd.f32 0.0, %v1056
  %1058 = vmatprep.mubr.bf16.mxu0 0
  %1059 = vmatmul.mubr.bf16.gmra.mrb[0].mxu0 %v539
  %v1060 = vpop.f32.mrb[0].mxu0
  %v1061 = vadd.f32 0.0, %v1060
  %v1062 = vpop.f32.mrb[0].mxu0
  %v1063 = vadd.f32 0.0, %v1062
  %v1064 = vpop.f32.mrb[0].mxu0
  %v1065 = vadd.f32 0.0, %v1064
  %v1066 = vpop.f32.mrb[0].mxu0
  %v1067 = vadd.f32 0.0, %v1066
  %1068 = vdwg.mxu0
  %v1069 = vadd.f32 %v861, %v1031
  %v1070 = vadd.f32 %v863, %v1033
  %v1071 = vadd.f32 %v865, %v1035
  %v1072 = vadd.f32 %v867, %v1037
  %v1073 = vadd.f32 %v871, %v1041
  %v1074 = vadd.f32 %v873, %v1043
  %v1075 = vadd.f32 %v875, %v1045
  %v1076 = vadd.f32 %v877, %v1047
  %v1077 = vadd.f32 %v881, %v1051
  %v1078 = vadd.f32 %v883, %v1053
  %v1079 = vadd.f32 %v885, %v1055
  %v1080 = vadd.f32 %v887, %v1057
  %v1081 = vadd.f32 %v891, %v1061
  %v1082 = vadd.f32 %v893, %v1063
  %v1083 = vadd.f32 %v895, %v1065
  %v1084 = vadd.f32 %v897, %v1067
  %s1085 = scalar_lea.vmem %s3, 384
  %v1086 = vld [vmem:[%s1085] sm:$0xff]
  %v1087 = vld [vmem:[%s1085 + $0x8] sm:$0xff]
  %v1088 = vld [vmem:[%s1085 + $0x10] sm:$0xff]
  %v1089 = vld [vmem:[%s1085 + $0x18] sm:$0xff]
  %v1090 = vld [vmem:[%s1085 + $0x20] sm:$0xff]
  %v1091 = vld [vmem:[%s1085 + $0x28] sm:$0xff]
  %v1092 = vld [vmem:[%s1085 + $0x30] sm:$0xff]
  %v1093 = vld [vmem:[%s1085 + $0x38] sm:$0xff]
  %v1094 = vld [vmem:[%s1085 + $0x40] sm:$0xff]
  %v1095 = vld [vmem:[%s1085 + $0x48] sm:$0xff]
  %v1096 = vld [vmem:[%s1085 + $0x50] sm:$0xff]
  %v1097 = vld [vmem:[%s1085 + $0x58] sm:$0xff]
  %v1098 = vld [vmem:[%s1085 + $0x60] sm:$0xff]
  %v1099 = vld [vmem:[%s1085 + $0x68] sm:$0xff]
  %v1100 = vld [vmem:[%s1085 + $0x70] sm:$0xff]
  %v1101 = vld [vmem:[%s1085 + $0x78] sm:$0xff]
  %v1103 = vrot.slane %v540, 4
  %v1104 = vsel %vm579, %v587, %v1103
  %v1122 = vunpack.c.l.b16 %v1086
  %v1123 = vunpack.c.h.b16 %v1086
  %v1124 = vunpack.c.l.b16 %v1087
  %v1125 = vunpack.c.h.b16 %v1087
  %v1126 = vunpack.c.l.b16 %v1088
  %v1127 = vunpack.c.h.b16 %v1088
  %v1128 = vunpack.c.l.b16 %v1089
  %v1129 = vunpack.c.h.b16 %v1089
  %v1130 = vunpack.c.l.b16 %v1090
  %v1131 = vunpack.c.h.b16 %v1090
  %v1132 = vunpack.c.l.b16 %v1091
  %v1133 = vunpack.c.h.b16 %v1091
  %v1134 = vunpack.c.l.b16 %v1092
  %v1135 = vunpack.c.h.b16 %v1092
  %v1136 = vunpack.c.l.b16 %v1093
  %v1137 = vunpack.c.h.b16 %v1093
  %v1138 = vunpack.c.l.b16 %v1094
  %v1139 = vunpack.c.h.b16 %v1094
  %v1140 = vunpack.c.l.b16 %v1095
  %v1141 = vunpack.c.h.b16 %v1095
  %v1142 = vunpack.c.l.b16 %v1096
  %v1143 = vunpack.c.h.b16 %v1096
  %v1144 = vunpack.c.l.b16 %v1097
  %v1145 = vunpack.c.h.b16 %v1097
  %v1146 = vunpack.c.l.b16 %v1098
  %v1147 = vunpack.c.h.b16 %v1098
  %v1148 = vunpack.c.l.b16 %v1099
  %v1149 = vunpack.c.h.b16 %v1099
  %v1150 = vunpack.c.l.b16 %v1100
  %v1151 = vunpack.c.h.b16 %v1100
  %v1152 = vunpack.c.l.b16 %v1101
  %v1153 = vunpack.c.h.b16 %v1101
  %v1154 = vpack.c.b16 %v1124, %v1122
  %v1155 = vpack.c.b16 %v1125, %v1123
  %v1156 = vpack.c.b16 %v1128, %v1126
  %v1157 = vpack.c.b16 %v1129, %v1127
  %v1158 = vpack.c.b16 %v1132, %v1130
  %v1159 = vpack.c.b16 %v1133, %v1131
  %v1160 = vpack.c.b16 %v1136, %v1134
  %v1161 = vpack.c.b16 %v1137, %v1135
  %v1162 = vpack.c.b16 %v1140, %v1138
  %v1163 = vpack.c.b16 %v1141, %v1139
  %v1164 = vpack.c.b16 %v1144, %v1142
  %v1165 = vpack.c.b16 %v1145, %v1143
  %v1166 = vpack.c.b16 %v1148, %v1146
  %v1167 = vpack.c.b16 %v1149, %v1147
  %v1168 = vpack.c.b16 %v1152, %v1150
  %v1169 = vpack.c.b16 %v1153, %v1151
  %1186 = vmatprep.subr.bf16.mxu0 %v1155
  %1187 = vmatpush1.bf16.msra.mxu0 %v1154
  %1188 = vmatprep.subr.bf16.mxu0 %v1157
  %1189 = vmatpush1.bf16.msra.mxu0 %v1156
  %1190 = vmatprep.subr.bf16.mxu0 %v1159
  %1191 = vmatpush1.bf16.msra.mxu0 %v1158
  %1192 = vmatprep.subr.bf16.mxu0 %v1161
  %1193 = vmatpush1.bf16.msra.mxu0 %v1160
  %1194 = vmatprep.subr.bf16.mxu0 %v1163
  %1195 = vmatpush1.bf16.msra.mxu0 %v1162
  %1196 = vmatprep.subr.bf16.mxu0 %v1165
  %1197 = vmatpush1.bf16.msra.mxu0 %v1164
  %1198 = vmatprep.subr.bf16.mxu0 %v1167
  %1199 = vmatpush1.bf16.msra.mxu0 %v1166
  %1200 = vmatprep.subr.bf16.mxu0 %v1169
  %1201 = vmatpush1.bf16.msra.mxu0 %v1168
  %1202 = vmatprep.subr.bf16.mxu0 0
  %1203 = vmatpush1.bf16.msra.mxu0 0
  %1204 = vmatprep.subr.bf16.mxu0 0
  %1205 = vmatpush1.bf16.msra.mxu0 0
  %1206 = vmatprep.subr.bf16.mxu0 0
  %1207 = vmatpush1.bf16.msra.mxu0 0
  %1208 = vmatprep.subr.bf16.mxu0 0
  %1209 = vmatpush1.bf16.msra.mxu0 0
  %1210 = vmatprep.subr.bf16.mxu0 0
  %1211 = vmatpush1.bf16.msra.mxu0 0
  %1212 = vmatprep.subr.bf16.mxu0 0
  %1213 = vmatpush1.bf16.msra.mxu0 0
  %1214 = vmatprep.subr.bf16.mxu0 0
  %1215 = vmatpush1.bf16.msra.mxu0 0
  %1216 = vmatprep.subr.bf16.mxu0 0
  %1217 = vmatpush1.bf16.msra.mxu0 0
  %1218 = vmatprep.mubr.bf16.mxu0 0
  %1219 = vmatmul.mubr.bf16.gmra.mrb[0].mxu0 %v584
  %v1220 = vpop.f32.mrb[0].mxu0
  %v1221 = vadd.f32 0.0, %v1220
  %v1222 = vpop.f32.mrb[0].mxu0
  %v1223 = vadd.f32 0.0, %v1222
  %v1224 = vpop.f32.mrb[0].mxu0
  %v1225 = vadd.f32 0.0, %v1224
  %v1226 = vpop.f32.mrb[0].mxu0
  %v1227 = vadd.f32 0.0, %v1226
  %1228 = vmatprep.mubr.bf16.mxu0 0
  %1229 = vmatmul.mubr.bf16.gmra.mrb[0].mxu0 %v586
  %v1230 = vpop.f32.mrb[0].mxu0
  %v1231 = vadd.f32 0.0, %v1230
  %v1232 = vpop.f32.mrb[0].mxu0
  %v1233 = vadd.f32 0.0, %v1232
  %v1234 = vpop.f32.mrb[0].mxu0
  %v1235 = vadd.f32 0.0, %v1234
  %v1236 = vpop.f32.mrb[0].mxu0
  %v1237 = vadd.f32 0.0, %v1236
  %1238 = vmatprep.mubr.bf16.mxu0 0
  %1239 = vmatmul.mubr.bf16.gmra.mrb[0].mxu0 %v588
  %v1240 = vpop.f32.mrb[0].mxu0
  %v1241 = vadd.f32 0.0, %v1240
  %v1242 = vpop.f32.mrb[0].mxu0
  %v1243 = vadd.f32 0.0, %v1242
  %v1244 = vpop.f32.mrb[0].mxu0
  %v1245 = vadd.f32 0.0, %v1244
  %v1246 = vpop.f32.mrb[0].mxu0
  %v1247 = vadd.f32 0.0, %v1246
  %1248 = vmatprep.mubr.bf16.mxu0 0
  %1249 = vmatmul.mubr.bf16.gmra.mrb[0].mxu0 %v1104
  %v1250 = vpop.f32.mrb[0].mxu0
  %v1251 = vadd.f32 0.0, %v1250
  %v1252 = vpop.f32.mrb[0].mxu0
  %v1253 = vadd.f32 0.0, %v1252
  %v1254 = vpop.f32.mrb[0].mxu0
  %v1255 = vadd.f32 0.0, %v1254
  %v1256 = vpop.f32.mrb[0].mxu0
  %v1257 = vadd.f32 0.0, %v1256
  %1258 = vdwg.mxu0
  %v1259 = vadd.f32 %v1069, %v1221
  %v1260 = vadd.f32 %v1070, %v1223
  %v1261 = vadd.f32 %v1071, %v1225
  %v1262 = vadd.f32 %v1072, %v1227
  %v1263 = vadd.f32 %v1073, %v1231
  %v1264 = vadd.f32 %v1074, %v1233
  %v1265 = vadd.f32 %v1075, %v1235
  %v1266 = vadd.f32 %v1076, %v1237
  %v1267 = vadd.f32 %v1077, %v1241
  %v1268 = vadd.f32 %v1078, %v1243
  %v1269 = vadd.f32 %v1079, %v1245
  %v1270 = vadd.f32 %v1080, %v1247
  %v1271 = vadd.f32 %v1081, %v1251
  %v1272 = vadd.f32 %v1082, %v1253
  %v1273 = vadd.f32 %v1083, %v1255
  %v1274 = vadd.f32 %v1084, %v1257
  %s1275 = scalar_lea.vmem %s3, 512
  %v1276 = vld [vmem:[%s1275] sm:$0xff]
  %v1277 = vld [vmem:[%s1275 + $0x8] sm:$0xff]
  %v1278 = vld [vmem:[%s1275 + $0x10] sm:$0xff]
  %v1279 = vld [vmem:[%s1275 + $0x18] sm:$0xff]
  %v1280 = vld [vmem:[%s1275 + $0x20] sm:$0xff]
  %v1281 = vld [vmem:[%s1275 + $0x28] sm:$0xff]
  %v1282 = vld [vmem:[%s1275 + $0x30] sm:$0xff]
  %v1283 = vld [vmem:[%s1275 + $0x38] sm:$0xff]
  %v1284 = vld [vmem:[%s1275 + $0x40] sm:$0xff]
  %v1285 = vld [vmem:[%s1275 + $0x48] sm:$0xff]
  %v1286 = vld [vmem:[%s1275 + $0x50] sm:$0xff]
  %v1287 = vld [vmem:[%s1275 + $0x58] sm:$0xff]
  %v1288 = vld [vmem:[%s1275 + $0x60] sm:$0xff]
  %v1289 = vld [vmem:[%s1275 + $0x68] sm:$0xff]
  %v1290 = vld [vmem:[%s1275 + $0x70] sm:$0xff]
  %v1291 = vld [vmem:[%s1275 + $0x78] sm:$0xff]
  %v1308 = vunpack.c.l.b16 %v1276
  %v1309 = vunpack.c.h.b16 %v1276
  %v1310 = vunpack.c.l.b16 %v1277
  %v1311 = vunpack.c.h.b16 %v1277
  %v1312 = vunpack.c.l.b16 %v1278
  %v1313 = vunpack.c.h.b16 %v1278
  %v1314 = vunpack.c.l.b16 %v1279
  %v1315 = vunpack.c.h.b16 %v1279
  %v1316 = vunpack.c.l.b16 %v1280
  %v1317 = vunpack.c.h.b16 %v1280
  %v1318 = vunpack.c.l.b16 %v1281
  %v1319 = vunpack.c.h.b16 %v1281
  %v1320 = vunpack.c.l.b16 %v1282
  %v1321 = vunpack.c.h.b16 %v1282
  %v1322 = vunpack.c.l.b16 %v1283
  %v1323 = vunpack.c.h.b16 %v1283
  %v1324 = vunpack.c.l.b16 %v1284
  %v1325 = vunpack.c.h.b16 %v1284
  %v1326 = vunpack.c.l.b16 %v1285
  %v1327 = vunpack.c.h.b16 %v1285
  %v1328 = vunpack.c.l.b16 %v1286
  %v1329 = vunpack.c.h.b16 %v1286
  %v1330 = vunpack.c.l.b16 %v1287
  %v1331 = vunpack.c.h.b16 %v1287
  %v1332 = vunpack.c.l.b16 %v1288
  %v1333 = vunpack.c.h.b16 %v1288
  %v1334 = vunpack.c.l.b16 %v1289
  %v1335 = vunpack.c.h.b16 %v1289
  %v1336 = vunpack.c.l.b16 %v1290
  %v1337 = vunpack.c.h.b16 %v1290
  %v1338 = vunpack.c.l.b16 %v1291
  %v1339 = vunpack.c.h.b16 %v1291
  %v1340 = vpack.c.b16 %v1310, %v1308
  %v1341 = vpack.c.b16 %v1311, %v1309
  %v1342 = vpack.c.b16 %v1314, %v1312
  %v1343 = vpack.c.b16 %v1315, %v1313
  %v1344 = vpack.c.b16 %v1318, %v1316
  %v1345 = vpack.c.b16 %v1319, %v1317
  %v1346 = vpack.c.b16 %v1322, %v1320
  %v1347 = vpack.c.b16 %v1323, %v1321
  %v1348 = vpack.c.b16 %v1326, %v1324
  %v1349 = vpack.c.b16 %v1327, %v1325
  %v1350 = vpack.c.b16 %v1330, %v1328
  %v1351 = vpack.c.b16 %v1331, %v1329
  %v1352 = vpack.c.b16 %v1334, %v1332
  %v1353 = vpack.c.b16 %v1335, %v1333
  %v1354 = vpack.c.b16 %v1338, %v1336
  %v1355 = vpack.c.b16 %v1339, %v1337
  %1372 = vmatprep.subr.bf16.mxu0 %v1341
  %1373 = vmatpush1.bf16.msra.mxu0 %v1340
  %1374 = vmatprep.subr.bf16.mxu0 %v1343
  %1375 = vmatpush1.bf16.msra.mxu0 %v1342
  %1376 = vmatprep.subr.bf16.mxu0 %v1345
  %1377 = vmatpush1.bf16.msra.mxu0 %v1344
  %1378 = vmatprep.subr.bf16.mxu0 %v1347
  %1379 = vmatpush1.bf16.msra.mxu0 %v1346
  %1380 = vmatprep.subr.bf16.mxu0 %v1349
  %1381 = vmatpush1.bf16.msra.mxu0 %v1348
  %1382 = vmatprep.subr.bf16.mxu0 %v1351
  %1383 = vmatpush1.bf16.msra.mxu0 %v1350
  %1384 = vmatprep.subr.bf16.mxu0 %v1353
  %1385 = vmatpush1.bf16.msra.mxu0 %v1352
  %1386 = vmatprep.subr.bf16.mxu0 %v1355
  %1387 = vmatpush1.bf16.msra.mxu0 %v1354
  %1388 = vmatprep.subr.bf16.mxu0 0
  %1389 = vmatpush1.bf16.msra.mxu0 0
  %1390 = vmatprep.subr.bf16.mxu0 0
  %1391 = vmatpush1.bf16.msra.mxu0 0
  %1392 = vmatprep.subr.bf16.mxu0 0
  %1393 = vmatpush1.bf16.msra.mxu0 0
  %1394 = vmatprep.subr.bf16.mxu0 0
  %1395 = vmatpush1.bf16.msra.mxu0 0
  %1396 = vmatprep.subr.bf16.mxu0 0
  %1397 = vmatpush1.bf16.msra.mxu0 0
  %1398 = vmatprep.subr.bf16.mxu0 0
  %1399 = vmatpush1.bf16.msra.mxu0 0
  %1400 = vmatprep.subr.bf16.mxu0 0
  %1401 = vmatpush1.bf16.msra.mxu0 0
  %1402 = vmatprep.subr.bf16.mxu0 0
  %1403 = vmatpush1.bf16.msra.mxu0 0
  %1404 = vmatprep.mubr.bf16.mxu0 0
  %1405 = vmatmul.mubr.bf16.gmra.mrb[0].mxu0 %v537
  %v1406 = vpop.f32.mrb[0].mxu0
  %v1407 = vadd.f32 0.0, %v1406
  %v1408 = vpop.f32.mrb[0].mxu0
  %v1409 = vadd.f32 0.0, %v1408
  %v1410 = vpop.f32.mrb[0].mxu0
  %v1411 = vadd.f32 0.0, %v1410
  %v1412 = vpop.f32.mrb[0].mxu0
  %v1413 = vadd.f32 0.0, %v1412
  %1414 = vmatprep.mubr.bf16.mxu0 0
  %1415 = vmatmul.mubr.bf16.gmra.mrb[0].mxu0 %v538
  %v1416 = vpop.f32.mrb[0].mxu0
  %v1417 = vadd.f32 0.0, %v1416
  %v1418 = vpop.f32.mrb[0].mxu0
  %v1419 = vadd.f32 0.0, %v1418
  %v1420 = vpop.f32.mrb[0].mxu0
  %v1421 = vadd.f32 0.0, %v1420
  %v1422 = vpop.f32.mrb[0].mxu0
  %v1423 = vadd.f32 0.0, %v1422
  %1424 = vmatprep.mubr.bf16.mxu0 0
  %1425 = vmatmul.mubr.bf16.gmra.mrb[0].mxu0 %v539
  %v1426 = vpop.f32.mrb[0].mxu0
  %v1427 = vadd.f32 0.0, %v1426
  %v1428 = vpop.f32.mrb[0].mxu0
  %v1429 = vadd.f32 0.0, %v1428
  %v1430 = vpop.f32.mrb[0].mxu0
  %v1431 = vadd.f32 0.0, %v1430
  %v1432 = vpop.f32.mrb[0].mxu0
  %v1433 = vadd.f32 0.0, %v1432
  %1434 = vmatprep.mubr.bf16.mxu0 0
  %1435 = vmatmul.mubr.bf16.gmra.mrb[0].mxu0 %v540
  %v1436 = vpop.f32.mrb[0].mxu0
  %v1437 = vadd.f32 0.0, %v1436
  %v1438 = vpop.f32.mrb[0].mxu0
  %v1439 = vadd.f32 0.0, %v1438
  %v1440 = vpop.f32.mrb[0].mxu0
  %v1441 = vadd.f32 0.0, %v1440
  %v1442 = vpop.f32.mrb[0].mxu0
  %v1443 = vadd.f32 0.0, %v1442
  %1444 = vdwg.mxu0
  %v1445 = vadd.f32 %v1259, %v1407
  %v1446 = vadd.f32 %v1260, %v1409
  %v1447 = vadd.f32 %v1261, %v1411
  %v1448 = vadd.f32 %v1262, %v1413
  %v1449 = vadd.f32 %v1263, %v1417
  %v1450 = vadd.f32 %v1264, %v1419
  %v1451 = vadd.f32 %v1265, %v1421
  %v1452 = vadd.f32 %v1266, %v1423
  %v1453 = vadd.f32 %v1267, %v1427
  %v1454 = vadd.f32 %v1268, %v1429
  %v1455 = vadd.f32 %v1269, %v1431
  %v1456 = vadd.f32 %v1270, %v1433
  %v1457 = vadd.f32 %v1271, %v1437
  %v1458 = vadd.f32 %v1272, %v1439
  %v1459 = vadd.f32 %v1273, %v1441
  %v1460 = vadd.f32 %v1274, %v1443
  %v1461 = vld [vmem:[%s4] sm:$0x3]
  %v1463 = vlaneseq
  %v1464 = vshrl.u32 %v1463, 7
  %v1465 = vsub.s32 0, %v1464
  %v1466 = vrot.slane %v1461, %v1465
  %v1467 = vlaneseq
  %v1468 = vshrl.u32 %v1467, 7
  %v1469 = vsub.s32 1, %v1468
  %v1470 = vrot.slane %v1461, %v1469
  %v1473 = vadd.f32 %v1445, %v1466
  %v1474 = vadd.f32 %v1446, %v1470
  %v1475 = vadd.f32 %v1447, %v1466
  %v1476 = vadd.f32 %v1448, %v1470
  %v1477 = vadd.f32 %v1449, %v1466
  %v1478 = vadd.f32 %v1450, %v1470
  %v1479 = vadd.f32 %v1451, %v1466
  %v1480 = vadd.f32 %v1452, %v1470
  %v1481 = vadd.f32 %v1453, %v1466
  %v1482 = vadd.f32 %v1454, %v1470
  %v1483 = vadd.f32 %v1455, %v1466
  %v1484 = vadd.f32 %v1456, %v1470
  %v1485 = vadd.f32 %v1457, %v1466
  %v1486 = vadd.f32 %v1458, %v1470
  %v1487 = vadd.f32 %v1459, %v1466
  %v1488 = vadd.f32 %v1460, %v1470
  %v1489 = vmax.f32 %v1473, %v1475
  %v1490 = vmax.f32 %v1474, %v1476
  %v1491 = vmax.f32 %v1477, %v1479
  %v1492 = vmax.f32 %v1478, %v1480
  %v1493 = vmax.f32 %v1481, %v1483
  %v1494 = vmax.f32 %v1482, %v1484
  %v1495 = vmax.f32 %v1485, %v1487
  %v1496 = vmax.f32 %v1486, %v1488
  %v1497 = vmax.f32 %v1489, %v1490
  %v1498 = vmax.f32 %v1491, %v1492
  %v1499 = vmax.f32 %v1493, %v1494
  %v1500 = vmax.f32 %v1495, %v1496
  %v1501 = vmax.f32 %v1497, 0.0
  %v1502 = vmax.f32 %v1498, 0.0
  %v1503 = vmax.f32 %v1499, 0.0
  %v1504 = vmax.f32 %v1500, 0.0
  %v1505 = vpack.c.bf16 %v1502, %v1501
  %v1506 = vpack.c.bf16 %v1504, %v1503
  %v1507 = vld [vmem:[%s5] sm:$0xf]
  %v1508 = vld [vmem:[%s5 + $0x4] sm:$0xf]
  %v1509 = vld [vmem:[%s5 + $0x8] sm:$0xf]
  %v1510 = vld [vmem:[%s5 + $0xc] sm:$0xf]
  %v1511 = vld [vmem:[%s5 + $0x10] sm:$0xf]
  %v1512 = vld [vmem:[%s5 + $0x14] sm:$0xf]
  %v1513 = vld [vmem:[%s5 + $0x18] sm:$0xf]
  %v1514 = vld [vmem:[%s5 + $0x1c] sm:$0xf]
  %v1515 = vld [vmem:[%s5 + $0x20] sm:$0xf]
  %v1516 = vld [vmem:[%s5 + $0x24] sm:$0xf]
  %v1517 = vld [vmem:[%s5 + $0x28] sm:$0xf]
  %v1518 = vld [vmem:[%s5 + $0x2c] sm:$0xf]
  %v1519 = vld [vmem:[%s5 + $0x30] sm:$0xf]
  %v1520 = vld [vmem:[%s5 + $0x34] sm:$0xf]
  %v1521 = vld [vmem:[%s5 + $0x38] sm:$0xf]
  %v1522 = vld [vmem:[%s5 + $0x3c] sm:$0xf]
  %s1523 = scalar_lea.vmem %s5, 64
  %v1524 = vld [vmem:[%s1523] sm:$0xf]
  %v1525 = vld [vmem:[%s1523 + $0x4] sm:$0xf]
  %v1526 = vld [vmem:[%s1523 + $0x8] sm:$0xf]
  %v1527 = vld [vmem:[%s1523 + $0xc] sm:$0xf]
  %v1528 = vld [vmem:[%s1523 + $0x10] sm:$0xf]
  %v1529 = vld [vmem:[%s1523 + $0x14] sm:$0xf]
  %v1530 = vld [vmem:[%s1523 + $0x18] sm:$0xf]
  %v1531 = vld [vmem:[%s1523 + $0x1c] sm:$0xf]
  %v1532 = vld [vmem:[%s1523 + $0x20] sm:$0xf]
  %v1533 = vld [vmem:[%s1523 + $0x24] sm:$0xf]
  %v1534 = vld [vmem:[%s1523 + $0x28] sm:$0xf]
  %v1535 = vld [vmem:[%s1523 + $0x2c] sm:$0xf]
  %v1536 = vld [vmem:[%s1523 + $0x30] sm:$0xf]
  %v1537 = vld [vmem:[%s1523 + $0x34] sm:$0xf]
  %v1538 = vld [vmem:[%s1523 + $0x38] sm:$0xf]
  %v1539 = vld [vmem:[%s1523 + $0x3c] sm:$0xf]
  %v1541 = vrot.slane %v1505, 4
  %v1559 = vunpack.c.l.b16 %v1524
  %v1560 = vunpack.c.l.b16 %v1525
  %v1561 = vunpack.c.l.b16 %v1526
  %v1562 = vunpack.c.l.b16 %v1527
  %v1563 = vunpack.c.l.b16 %v1528
  %v1564 = vunpack.c.l.b16 %v1529
  %v1565 = vunpack.c.l.b16 %v1530
  %v1566 = vunpack.c.l.b16 %v1531
  %v1567 = vunpack.c.l.b16 %v1532
  %v1568 = vunpack.c.l.b16 %v1533
  %v1569 = vunpack.c.l.b16 %v1534
  %v1570 = vunpack.c.l.b16 %v1535
  %v1571 = vunpack.c.l.b16 %v1536
  %v1572 = vunpack.c.l.b16 %v1537
  %v1573 = vunpack.c.l.b16 %v1538
  %v1574 = vunpack.c.l.b16 %v1539
  %v1575 = vpack.c.b16 %v1560, %v1559
  %v1576 = vpack.c.b16 %v1562, %v1561
  %v1577 = vpack.c.b16 %v1564, %v1563
  %v1578 = vpack.c.b16 %v1566, %v1565
  %v1579 = vpack.c.b16 %v1568, %v1567
  %v1580 = vpack.c.b16 %v1570, %v1569
  %v1581 = vpack.c.b16 %v1572, %v1571
  %v1582 = vpack.c.b16 %v1574, %v1573
  %1591 = vmatprep.subr.bf16.mxu0 0
  %1592 = vmatpush1.bf16.msra.mxu0 %v1575
  %1593 = vmatprep.subr.bf16.mxu0 0
  %1594 = vmatpush1.bf16.msra.mxu0 %v1576
  %1595 = vmatprep.subr.bf16.mxu0 0
  %1596 = vmatpush1.bf16.msra.mxu0 %v1577
  %1597 = vmatprep.subr.bf16.mxu0 0
  %1598 = vmatpush1.bf16.msra.mxu0 %v1578
  %1599 = vmatprep.subr.bf16.mxu0 0
  %1600 = vmatpush1.bf16.msra.mxu0 %v1579
  %1601 = vmatprep.subr.bf16.mxu0 0
  %1602 = vmatpush1.bf16.msra.mxu0 %v1580
  %1603 = vmatprep.subr.bf16.mxu0 0
  %1604 = vmatpush1.bf16.msra.mxu0 %v1581
  %1605 = vmatprep.subr.bf16.mxu0 0
  %1606 = vmatpush1.bf16.msra.mxu0 %v1582
  %1607 = vmatprep.subr.bf16.mxu0 0
  %1608 = vmatpush1.bf16.msra.mxu0 0
  %1609 = vmatprep.subr.bf16.mxu0 0
  %1610 = vmatpush1.bf16.msra.mxu0 0
  %1611 = vmatprep.subr.bf16.mxu0 0
  %1612 = vmatpush1.bf16.msra.mxu0 0
  %1613 = vmatprep.subr.bf16.mxu0 0
  %1614 = vmatpush1.bf16.msra.mxu0 0
  %1615 = vmatprep.subr.bf16.mxu0 0
  %1616 = vmatpush1.bf16.msra.mxu0 0
  %1617 = vmatprep.subr.bf16.mxu0 0
  %1618 = vmatpush1.bf16.msra.mxu0 0
  %1619 = vmatprep.subr.bf16.mxu0 0
  %1620 = vmatpush1.bf16.msra.mxu0 0
  %1621 = vmatprep.subr.bf16.mxu0 0
  %1622 = vmatpush1.bf16.msra.mxu0 0
  %1623 = vmatprep.mubr.bf16.mxu0 0
  %1624 = vmatmul.mubr.bf16.gmra.mrb[0].mxu0 %v1541
  %v1625 = vpop.f32.mrb[0].mxu0
  %v1626 = vadd.f32 0.0, %v1625
  %v1627 = vpop.f32.mrb[0].mxu0
  %v1628 = vpop.f32.mrb[0].mxu0
  %v1629 = vpop.f32.mrb[0].mxu0
  %1630 = vdwg.mxu0
  %v1647 = vunpack.c.l.b16 %v1507
  %v1648 = vunpack.c.l.b16 %v1508
  %v1649 = vunpack.c.l.b16 %v1509
  %v1650 = vunpack.c.l.b16 %v1510
  %v1651 = vunpack.c.l.b16 %v1511
  %v1652 = vunpack.c.l.b16 %v1512
  %v1653 = vunpack.c.l.b16 %v1513
  %v1654 = vunpack.c.l.b16 %v1514
  %v1655 = vunpack.c.l.b16 %v1515
  %v1656 = vunpack.c.l.b16 %v1516
  %v1657 = vunpack.c.l.b16 %v1517
  %v1658 = vunpack.c.l.b16 %v1518
  %v1659 = vunpack.c.l.b16 %v1519
  %v1660 = vunpack.c.l.b16 %v1520
  %v1661 = vunpack.c.l.b16 %v1521
  %v1662 = vunpack.c.l.b16 %v1522
  %v1663 = vpack.c.b16 %v1648, %v1647
  %v1664 = vpack.c.b16 %v1650, %v1649
  %v1665 = vpack.c.b16 %v1652, %v1651
  %v1666 = vpack.c.b16 %v1654, %v1653
  %v1667 = vpack.c.b16 %v1656, %v1655
  %v1668 = vpack.c.b16 %v1658, %v1657
  %v1669 = vpack.c.b16 %v1660, %v1659
  %v1670 = vpack.c.b16 %v1662, %v1661
  %1679 = vmatprep.subr.bf16.mxu0 0
  %1680 = vmatpush1.bf16.msra.mxu0 %v1663
  %1681 = vmatprep.subr.bf16.mxu0 0
  %1682 = vmatpush1.bf16.msra.mxu0 %v1664
  %1683 = vmatprep.subr.bf16.mxu0 0
  %1684 = vmatpush1.bf16.msra.mxu0 %v1665
  %1685 = vmatprep.subr.bf16.mxu0 0
  %1686 = vmatpush1.bf16.msra.mxu0 %v1666
  %1687 = vmatprep.subr.bf16.mxu0 0
  %1688 = vmatpush1.bf16.msra.mxu0 %v1667
  %1689 = vmatprep.subr.bf16.mxu0 0
  %1690 = vmatpush1.bf16.msra.mxu0 %v1668
  %1691 = vmatprep.subr.bf16.mxu0 0
  %1692 = vmatpush1.bf16.msra.mxu0 %v1669
  %1693 = vmatprep.subr.bf16.mxu0 0
  %1694 = vmatpush1.bf16.msra.mxu0 %v1670
  %1695 = vmatprep.subr.bf16.mxu0 0
  %1696 = vmatpush1.bf16.msra.mxu0 0
  %1697 = vmatprep.subr.bf16.mxu0 0
  %1698 = vmatpush1.bf16.msra.mxu0 0
  %1699 = vmatprep.subr.bf16.mxu0 0
  %1700 = vmatpush1.bf16.msra.mxu0 0
  %1701 = vmatprep.subr.bf16.mxu0 0
  %1702 = vmatpush1.bf16.msra.mxu0 0
  %1703 = vmatprep.subr.bf16.mxu0 0
  %1704 = vmatpush1.bf16.msra.mxu0 0
  %1705 = vmatprep.subr.bf16.mxu0 0
  %1706 = vmatpush1.bf16.msra.mxu0 0
  %1707 = vmatprep.subr.bf16.mxu0 0
  %1708 = vmatpush1.bf16.msra.mxu0 0
  %1709 = vmatprep.subr.bf16.mxu0 0
  %1710 = vmatpush1.bf16.msra.mxu0 0
  %1711 = vmatprep.mubr.bf16.mxu0 0
  %1712 = vmatmul.mubr.bf16.gmra.mrb[0].mxu0 %v1505
  %v1713 = vpop.f32.mrb[0].mxu0
  %v1714 = vadd.f32 %v1626, %v1713
  %v1715 = vpop.f32.mrb[0].mxu0
  %v1716 = vpop.f32.mrb[0].mxu0
  %v1717 = vpop.f32.mrb[0].mxu0
  %1718 = vdwg.mxu0
  %s1719 = scalar_lea.vmem %s5, 128
  %v1720 = vld [vmem:[%s1719] sm:$0xf]
  %v1721 = vld [vmem:[%s1719 + $0x4] sm:$0xf]
  %v1722 = vld [vmem:[%s1719 + $0x8] sm:$0xf]
  %v1723 = vld [vmem:[%s1719 + $0xc] sm:$0xf]
  %v1724 = vld [vmem:[%s1719 + $0x10] sm:$0xf]
  %v1725 = vld [vmem:[%s1719 + $0x14] sm:$0xf]
  %v1726 = vld [vmem:[%s1719 + $0x18] sm:$0xf]
  %v1727 = vld [vmem:[%s1719 + $0x1c] sm:$0xf]
  %v1728 = vld [vmem:[%s1719 + $0x20] sm:$0xf]
  %v1729 = vld [vmem:[%s1719 + $0x24] sm:$0xf]
  %v1730 = vld [vmem:[%s1719 + $0x28] sm:$0xf]
  %v1731 = vld [vmem:[%s1719 + $0x2c] sm:$0xf]
  %v1732 = vld [vmem:[%s1719 + $0x30] sm:$0xf]
  %v1733 = vld [vmem:[%s1719 + $0x34] sm:$0xf]
  %v1734 = vld [vmem:[%s1719 + $0x38] sm:$0xf]
  %v1735 = vld [vmem:[%s1719 + $0x3c] sm:$0xf]
  %v1752 = vunpack.c.l.b16 %v1720
  %v1753 = vunpack.c.l.b16 %v1721
  %v1754 = vunpack.c.l.b16 %v1722
  %v1755 = vunpack.c.l.b16 %v1723
  %v1756 = vunpack.c.l.b16 %v1724
  %v1757 = vunpack.c.l.b16 %v1725
  %v1758 = vunpack.c.l.b16 %v1726
  %v1759 = vunpack.c.l.b16 %v1727
  %v1760 = vunpack.c.l.b16 %v1728
  %v1761 = vunpack.c.l.b16 %v1729
  %v1762 = vunpack.c.l.b16 %v1730
  %v1763 = vunpack.c.l.b16 %v1731
  %v1764 = vunpack.c.l.b16 %v1732
  %v1765 = vunpack.c.l.b16 %v1733
  %v1766 = vunpack.c.l.b16 %v1734
  %v1767 = vunpack.c.l.b16 %v1735
  %v1768 = vpack.c.b16 %v1753, %v1752
  %v1769 = vpack.c.b16 %v1755, %v1754
  %v1770 = vpack.c.b16 %v1757, %v1756
  %v1771 = vpack.c.b16 %v1759, %v1758
  %v1772 = vpack.c.b16 %v1761, %v1760
  %v1773 = vpack.c.b16 %v1763, %v1762
  %v1774 = vpack.c.b16 %v1765, %v1764
  %v1775 = vpack.c.b16 %v1767, %v1766
  %1784 = vmatprep.subr.bf16.mxu0 0
  %1785 = vmatpush1.bf16.msra.mxu0 %v1768
  %1786 = vmatprep.subr.bf16.mxu0 0
  %1787 = vmatpush1.bf16.msra.mxu0 %v1769
  %1788 = vmatprep.subr.bf16.mxu0 0
  %1789 = vmatpush1.bf16.msra.mxu0 %v1770
  %1790 = vmatprep.subr.bf16.mxu0 0
  %1791 = vmatpush1.bf16.msra.mxu0 %v1771
  %1792 = vmatprep.subr.bf16.mxu0 0
  %1793 = vmatpush1.bf16.msra.mxu0 %v1772
  %1794 = vmatprep.subr.bf16.mxu0 0
  %1795 = vmatpush1.bf16.msra.mxu0 %v1773
  %1796 = vmatprep.subr.bf16.mxu0 0
  %1797 = vmatpush1.bf16.msra.mxu0 %v1774
  %1798 = vmatprep.subr.bf16.mxu0 0
  %1799 = vmatpush1.bf16.msra.mxu0 %v1775
  %1800 = vmatprep.subr.bf16.mxu0 0
  %1801 = vmatpush1.bf16.msra.mxu0 0
  %1802 = vmatprep.subr.bf16.mxu0 0
  %1803 = vmatpush1.bf16.msra.mxu0 0
  %1804 = vmatprep.subr.bf16.mxu0 0
  %1805 = vmatpush1.bf16.msra.mxu0 0
  %1806 = vmatprep.subr.bf16.mxu0 0
  %1807 = vmatpush1.bf16.msra.mxu0 0
  %1808 = vmatprep.subr.bf16.mxu0 0
  %1809 = vmatpush1.bf16.msra.mxu0 0
  %1810 = vmatprep.subr.bf16.mxu0 0
  %1811 = vmatpush1.bf16.msra.mxu0 0
  %1812 = vmatprep.subr.bf16.mxu0 0
  %1813 = vmatpush1.bf16.msra.mxu0 0
  %1814 = vmatprep.subr.bf16.mxu0 0
  %1815 = vmatpush1.bf16.msra.mxu0 0
  %1816 = vmatprep.mubr.bf16.mxu0 0
  %1817 = vmatmul.mubr.bf16.gmra.mrb[0].mxu0 %v1506
  %v1818 = vpop.f32.mrb[0].mxu0
  %v1819 = vadd.f32 0.0, %v1818
  %v1820 = vpop.f32.mrb[0].mxu0
  %v1821 = vpop.f32.mrb[0].mxu0
  %v1822 = vpop.f32.mrb[0].mxu0
  %1823 = vdwg.mxu0
  %v1824 = vadd.f32 %v1714, %v1819
  %s1825 = scalar_lea.vmem %s5, 192
  %v1826 = vld [vmem:[%s1825] sm:$0xf]
  %v1827 = vld [vmem:[%s1825 + $0x4] sm:$0xf]
  %v1828 = vld [vmem:[%s1825 + $0x8] sm:$0xf]
  %v1829 = vld [vmem:[%s1825 + $0xc] sm:$0xf]
  %v1830 = vld [vmem:[%s1825 + $0x10] sm:$0xf]
  %v1831 = vld [vmem:[%s1825 + $0x14] sm:$0xf]
  %v1832 = vld [vmem:[%s1825 + $0x18] sm:$0xf]
  %v1833 = vld [vmem:[%s1825 + $0x1c] sm:$0xf]
  %v1834 = vld [vmem:[%s1825 + $0x20] sm:$0xf]
  %v1835 = vld [vmem:[%s1825 + $0x24] sm:$0xf]
  %v1836 = vld [vmem:[%s1825 + $0x28] sm:$0xf]
  %v1837 = vld [vmem:[%s1825 + $0x2c] sm:$0xf]
  %v1838 = vld [vmem:[%s1825 + $0x30] sm:$0xf]
  %v1839 = vld [vmem:[%s1825 + $0x34] sm:$0xf]
  %v1840 = vld [vmem:[%s1825 + $0x38] sm:$0xf]
  %v1841 = vld [vmem:[%s1825 + $0x3c] sm:$0xf]
  %v1843 = vrot.slane %v1506, 4
  %v1861 = vunpack.c.l.b16 %v1826
  %v1862 = vunpack.c.l.b16 %v1827
  %v1863 = vunpack.c.l.b16 %v1828
  %v1864 = vunpack.c.l.b16 %v1829
  %v1865 = vunpack.c.l.b16 %v1830
  %v1866 = vunpack.c.l.b16 %v1831
  %v1867 = vunpack.c.l.b16 %v1832
  %v1868 = vunpack.c.l.b16 %v1833
  %v1869 = vunpack.c.l.b16 %v1834
  %v1870 = vunpack.c.l.b16 %v1835
  %v1871 = vunpack.c.l.b16 %v1836
  %v1872 = vunpack.c.l.b16 %v1837
  %v1873 = vunpack.c.l.b16 %v1838
  %v1874 = vunpack.c.l.b16 %v1839
  %v1875 = vunpack.c.l.b16 %v1840
  %v1876 = vunpack.c.l.b16 %v1841
  %v1877 = vpack.c.b16 %v1862, %v1861
  %v1878 = vpack.c.b16 %v1864, %v1863
  %v1879 = vpack.c.b16 %v1866, %v1865
  %v1880 = vpack.c.b16 %v1868, %v1867
  %v1881 = vpack.c.b16 %v1870, %v1869
  %v1882 = vpack.c.b16 %v1872, %v1871
  %v1883 = vpack.c.b16 %v1874, %v1873
  %v1884 = vpack.c.b16 %v1876, %v1875
  %1893 = vmatprep.subr.bf16.mxu0 0
  %1894 = vmatpush1.bf16.msra.mxu0 %v1877
  %1895 = vmatprep.subr.bf16.mxu0 0
  %1896 = vmatpush1.bf16.msra.mxu0 %v1878
  %1897 = vmatprep.subr.bf16.mxu0 0
  %1898 = vmatpush1.bf16.msra.mxu0 %v1879
  %1899 = vmatprep.subr.bf16.mxu0 0
  %1900 = vmatpush1.bf16.msra.mxu0 %v1880
  %1901 = vmatprep.subr.bf16.mxu0 0
  %1902 = vmatpush1.bf16.msra.mxu0 %v1881
  %1903 = vmatprep.subr.bf16.mxu0 0
  %1904 = vmatpush1.bf16.msra.mxu0 %v1882
  %1905 = vmatprep.subr.bf16.mxu0 0
  %1906 = vmatpush1.bf16.msra.mxu0 %v1883
  %1907 = vmatprep.subr.bf16.mxu0 0
  %1908 = vmatpush1.bf16.msra.mxu0 %v1884
  %1909 = vmatprep.subr.bf16.mxu0 0
  %1910 = vmatpush1.bf16.msra.mxu0 0
  %1911 = vmatprep.subr.bf16.mxu0 0
  %1912 = vmatpush1.bf16.msra.mxu0 0
  %1913 = vmatprep.subr.bf16.mxu0 0
  %1914 = vmatpush1.bf16.msra.mxu0 0
  %1915 = vmatprep.subr.bf16.mxu0 0
  %1916 = vmatpush1.bf16.msra.mxu0 0
  %1917 = vmatprep.subr.bf16.mxu0 0
  %1918 = vmatpush1.bf16.msra.mxu0 0
  %1919 = vmatprep.subr.bf16.mxu0 0
  %1920 = vmatpush1.bf16.msra.mxu0 0
  %1921 = vmatprep.subr.bf16.mxu0 0
  %1922 = vmatpush1.bf16.msra.mxu0 0
  %1923 = vmatprep.subr.bf16.mxu0 0
  %1924 = vmatpush1.bf16.msra.mxu0 0
  %1925 = vmatprep.mubr.bf16.mxu0 0
  %1926 = vmatmul.mubr.bf16.gmra.mrb[0].mxu0 %v1843
  %v1927 = vpop.f32.mrb[0].mxu0
  %v1928 = vadd.f32 0.0, %v1927
  %v1929 = vpop.f32.mrb[0].mxu0
  %v1930 = vpop.f32.mrb[0].mxu0
  %v1931 = vpop.f32.mrb[0].mxu0
  %1932 = vdwg.mxu0
  %v1933 = vadd.f32 %v1824, %v1928
  %v1934 = vld [vmem:[%s6] sm:$0x1]
  %v1936 = vlaneseq
  %v1937 = vshrl.u32 %v1936, 7
  %v1938 = vsub.s32 0, %v1937
  %v1939 = vrot.slane %v1934, %v1938
  %v1941 = vadd.f32 %v1933, %v1939
  %v1942 = vmax.f32 %v1941, 0.0
  %v1943 = vpack.c.bf16 %v1942, %v1942
  %v1944 = vld [vmem:[%s7] sm:$0xf]
  %v1945 = vld [vmem:[%s7 + $0x4] sm:$0xf]
  %v1946 = vld [vmem:[%s7 + $0x8] sm:$0xf]
  %v1947 = vld [vmem:[%s7 + $0xc] sm:$0xf]
  %v1948 = vld [vmem:[%s7 + $0x10] sm:$0xf]
  %v1949 = vld [vmem:[%s7 + $0x14] sm:$0xf]
  %v1950 = vld [vmem:[%s7 + $0x18] sm:$0x1]
  %v1951 = vld [vmem:[%s8] sm:$0x1]
  %v1953 = vlaneseq
  %v1954 = vshrl.u32 %v1953, 7
  %v1955 = vsub.s32 0, %v1954
  %v1956 = vrot.slane %v1951, %v1955
  %v1965 = vunpack.c.l.b16 %v1944
  %v1966 = vunpack.c.l.b16 %v1945
  %v1967 = vunpack.c.l.b16 %v1946
  %v1968 = vunpack.c.l.b16 %v1947
  %v1969 = vunpack.c.l.b16 %v1948
  %v1970 = vunpack.c.l.b16 %v1949
  %v1971 = vunpack.c.l.b16 %v1950
  %v1972 = vpack.c.b16 %v1966, %v1965
  %v1973 = vpack.c.b16 %v1968, %v1967
  %v1974 = vpack.c.b16 %v1970, %v1969
  %v1975 = vpack.c.b16 %v1971, %v1971
  %vm1979 = vcmask 408576
  %v1981 = vsel %vm1979, %v1943, 0
  %vm1983 = vcmask 1040384
  %v1985 = vsel %vm1983, %v1975, 0
  %1987 = vmatprep.subr.bf16.mxu0 0
  %1988 = vmatpush1.bf16.msra.mxu0 %v1972
  %1989 = vmatprep.subr.bf16.mxu0 0
  %1990 = vmatpush1.bf16.msra.mxu0 %v1973
  %1991 = vmatprep.subr.bf16.mxu0 0
  %1992 = vmatpush1.bf16.msra.mxu0 %v1974
  %1993 = vmatprep.subr.bf16.mxu0 0
  %1994 = vmatpush1.bf16.msra.mxu0 %v1985
  %1995 = vmatprep.subr.bf16.mxu0 0
  %1996 = vmatpush1.bf16.msra.mxu0 0
  %1997 = vmatprep.subr.bf16.mxu0 0
  %1998 = vmatpush1.bf16.msra.mxu0 0
  %1999 = vmatprep.subr.bf16.mxu0 0
  %2000 = vmatpush1.bf16.msra.mxu0 0
  %2001 = vmatprep.subr.bf16.mxu0 0
  %2002 = vmatpush1.bf16.msra.mxu0 0
  %2003 = vmatprep.subr.bf16.mxu0 0
  %2004 = vmatpush1.bf16.msra.mxu0 0
  %2005 = vmatprep.subr.bf16.mxu0 0
  %2006 = vmatpush1.bf16.msra.mxu0 0
  %2007 = vmatprep.subr.bf16.mxu0 0
  %2008 = vmatpush1.bf16.msra.mxu0 0
  %2009 = vmatprep.subr.bf16.mxu0 0
  %2010 = vmatpush1.bf16.msra.mxu0 0
  %2011 = vmatprep.subr.bf16.mxu0 0
  %2012 = vmatpush1.bf16.msra.mxu0 0
  %2013 = vmatprep.subr.bf16.mxu0 0
  %2014 = vmatpush1.bf16.msra.mxu0 0
  %2015 = vmatprep.subr.bf16.mxu0 0
  %2016 = vmatpush1.bf16.msra.mxu0 0
  %2017 = vmatprep.subr.bf16.mxu0 0
  %2018 = vmatpush1.bf16.msra.mxu0 0
  %2019 = vmatprep.mubr.bf16.mxu0 0
  %2020 = vmatmul.mubr.bf16.gmra.mrb[0].mxu0 %v1981
  %v2021 = vpop.f32.mrb[0].mxu0
  %v2022 = vadd.f32 %v1956, %v2021
  %v2023 = vpop.f32.mrb[0].mxu0
  %v2024 = vpop.f32.mrb[0].mxu0
  %v2025 = vpop.f32.mrb[0].mxu0
  %2026 = vdwg.mxu0
  %2027 = vmax.xlane.f32.xlu0 %v2022
  %v2028 = vpop.xlane.xlu0 %2027
  %v2029 = vsub.f32 %v2022, %v2028
  %v2030 = vmul.f32 %v2029, 1.442695
  %v2031 = vpow.pop %v2030
  %2032 = vadd.xlane.f32.xlu0 %v2031
  %v2033 = vpop.xlane.xlu0 %2032
  %v2034 = vlog2.pop %v2033
  %v2035 = vmul.f32 %v2034, 0.6931472
  %v2036 = vsub.f32 %v2029, %v2035
  %2037 = vst [vmem:[%s9] sm:$0xff] %v2036
  // Predicated region
  $region38: #{cnn_mnist_forward.1} parent=0 // pred_check
    _
  $region39: #{cnn_mnist_forward.1} parent=0 // pred_check_branch
    %2039 = sbr.rel (0) target = $region41
  $region40: #{cnn_mnist_forward.1} parent=0 // pred_region
    _
  $region41: #{cnn_mnist_forward.1} parent=0 // pred_fallthru
    _
  // Predicated region
  $region42: #{cnn_mnist_forward.1} parent=0 // pred_check
    _
  $region43: #{cnn_mnist_forward.1} parent=0 // pred_check_branch
    %2041 = sbr.rel (0) target = $region45
  $region44: #{cnn_mnist_forward.1} parent=0 // pred_region
    _
  $region45: #{cnn_mnist_forward.1} parent=0 // pred_fallthru
    _

</llo_original>
